<compile_context>
chip_gen: v6e
topology: v6e:2x2x1
jax: 0.10.0
libtpu: 0.0.40
codegen_flags: <defaults>
</compile_context>

<pallas_src>
import functools

import jax
import jax.numpy as jnp
from jax import lax
from jax.experimental import pallas as pl
from jax.experimental.pallas import tpu as pltpu


def _round_up(a, b):
    return (a + b - 1) // b * b


# ----------------------------------------------------------------------------
# Fused kernel.  Grid = (phase, image).
#   phase 0: in-kernel im2col conv (+bias) -> BN statistics (conv discarded)
#   phase 1: recompute conv (+bias) -> BN + ReLU -> store
# ----------------------------------------------------------------------------
def _fused_atrous_bn_relu_kernel(x_ref, w_ref, bias_ref, gamma_ref, beta_ref,
                                 mask_ref,                                   # inputs
                                 out_ref,                                    # output
                                 sum_ref, sumsq_ref, scale_ref, shift_ref,   # scratch
                                 *, shifts, L, n_valid, eps):
    p = pl.program_id(0)        # phase
    n = pl.program_id(1)        # image index
    del n  # only used via index_maps / the (p==?, n==0) predicates below
    n = pl.program_id(1)

    def conv_image():
        # In-kernel im2col: each tap is a static flat shift of the padded image.
        acc = None
        for t, s in enumerate(shifts):
            x_tap = x_ref[:, pl.ds(s, L)]                        # (Cin, L) bf16
            part = jnp.dot(w_ref[t], x_tap,                      # (Cout,Cin)@(Cin,L)
                           preferred_element_type=jnp.float32)
            acc = part if acc is None else acc + part
        return acc + bias_ref[...]                               # (Cout, L) f32

    @pl.when(jnp.logical_and(p == 0, n == 0))
    def _init_stats():
        sum_ref[...] = jnp.zeros_like(sum_ref)
        sumsq_ref[...] = jnp.zeros_like(sumsq_ref)

    @pl.when(p == 0)
    def _conv_and_stats():
        y = conv_image() * mask_ref[...]      # zero padded / tail lanes out of stats
        sum_ref[...] += jnp.sum(y, axis=1, keepdims=True)        # (Cout, 1)
        sumsq_ref[...] += jnp.sum(y * y, axis=1, keepdims=True)

    @pl.when(jnp.logical_and(p == 1, n == 0))
    def _finalize_stats():
        inv_cnt = 1.0 / float(n_valid)
        mean = sum_ref[...] * inv_cnt
        var = sumsq_ref[...] * inv_cnt - mean * mean
        var = jnp.maximum(var, 0.0)           # guard cancellation -> NaN
        inv_std = lax.rsqrt(var + eps)
        scale = gamma_ref[...] * inv_std
        scale_ref[...] = scale
        shift_ref[...] = beta_ref[...] - mean * scale

    @pl.when(p == 1)
    def _conv_bn_relu():
        y = conv_image()
        out = y * scale_ref[...] + shift_ref[...]
        out_ref[...] = jnp.maximum(out, 0.0).astype(out_ref.dtype)


# ----------------------------------------------------------------------------
# Wrapper
# ----------------------------------------------------------------------------
def atrous_convolution_forward(x_nchw, weight_oihw, conv_bias, gamma, beta, *,
                               dilation, eps=1e-5, compute_dtype=jnp.bfloat16):
    N, Cin, H, W = x_nchw.shape
    Cout, Cin_w, KH, KW = weight_oihw.shape
    assert Cin_w == Cin
    pad = dilation
    H_out = H + 2 * pad - dilation * (KH - 1)
    W_out = W + 2 * pad - dilation * (KW - 1)
    H_pad, W_pad = H + 2 * pad, W + 2 * pad
    assert H_out >= 1 and W_out >= 1
    f32 = jnp.float32

    # Flat-shift geometry: output pixel (h, w) lives at flat position h*W_pad + w
    # of the padded image; tap (kh, kw) reads flat position + kh*d*W_pad + kw*d.
    L = _round_up(H_out * W_pad, 128)                       # lane-dense compute width
    shifts = tuple(kh * dilation * W_pad + kw * dilation
                   for kh in range(KH) for kw in range(KW))
    P = _round_up(max(shifts) + L, 128)                     # padded flat image length

    # ---- host glue: bf16 cast + zero pad; NO im2col buffer, NO transpose -------
    x_p = jnp.pad(x_nchw.astype(compute_dtype),
                  ((0, 0), (0, 0), (pad, pad), (pad, pad)))         # (N,Cin,H_pad,W_pad)
    x_flat = x_p.reshape(N, Cin, H_pad * W_pad)
    x_flat = jnp.pad(x_flat, ((0, 0), (0, 0), (0, P - H_pad * W_pad)))

    # weight OIHW -> (KH*KW, Cout, Cin), matching the `shifts` tap order.
    w_taps = jnp.transpose(weight_oihw, (2, 3, 0, 1)).reshape(KH * KW, Cout, Cin)
    w_taps = w_taps.astype(compute_dtype)

    bias2 = conv_bias.reshape(Cout, 1).astype(f32)
    gamma2 = gamma.reshape(Cout, 1).astype(f32)
    beta2 = beta.reshape(Cout, 1).astype(f32)

    # Lane-validity mask: 1 for real output pixels, 0 for W-padding / lane tail.
    col = jnp.arange(L)
    mask = ((col < H_out * W_pad) & ((col % W_pad) < W_out)).astype(f32).reshape(1, L)

    n_valid = N * H_out * W_out
    kernel = functools.partial(_fused_atrous_bn_relu_kernel,
                               shifts=shifts, L=L, n_valid=n_valid, eps=float(eps))

    # VMEM budget: double-buffered x / out blocks + small constants, with margin.
    isz = jnp.dtype(compute_dtype).itemsize
    vmem_need = (2 * Cin * P * isz + 2 * Cout * L * 4
                 + KH * KW * Cout * Cin * isz + (L + 4 * Cout) * 4 + (1 << 16))
    vmem_limit = int(min(64 << 20, max(8 * vmem_need, 16 << 20)))

    out3 = pl.pallas_call(
        kernel,
        grid=(2, N),                                    # (phase, image)
        in_specs=[
            pl.BlockSpec((None, Cin, P), lambda p, n: (n, 0, 0)),        # image block
            pl.BlockSpec((KH * KW, Cout, Cin), lambda p, n: (0, 0, 0)),  # tap weights
            pl.BlockSpec((Cout, 1), lambda p, n: (0, 0)),                # bias
            pl.BlockSpec((Cout, 1), lambda p, n: (0, 0)),                # gamma
            pl.BlockSpec((Cout, 1), lambda p, n: (0, 0)),                # beta
            pl.BlockSpec((1, L), lambda p, n: (0, 0)),                   # valid mask
        ],
        # Phase 0 never writes the output; pin its block index to 0 so each output
        # block is flushed to HBM exactly once, after phase 1 wrote real data.
        out_specs=pl.BlockSpec((None, Cout, L), lambda p, n: (p * n, 0, 0)),
        out_shape=jax.ShapeDtypeStruct((N, Cout, L), f32),
        scratch_shapes=[pltpu.VMEM((Cout, 1), f32)] * 4,   # sum, sumsq, scale, shift
        compiler_params=pltpu.CompilerParams(
            dimension_semantics=("arbitrary", "arbitrary"),
            vmem_limit_bytes=vmem_limit),
    )(x_flat, w_taps, bias2, gamma2, beta2, mask)

    # (N, Cout, L) -> NCHW by slicing off the W-padding / lane tail (no transpose).
    out = out3[:, :, :H_out * W_pad].reshape(N, Cout, H_out, W_pad)[:, :, :, :W_out]
    return out


# ----------------------------------------------------------------------------
# Pure-JAX reference (f32 everywhere)
# ----------------------------------------------------------------------------
def reference_forward(x, weight, conv_bias, gamma, beta, *, dilation, eps=1e-5):
    pad = dilation
    y = lax.conv_general_dilated(
        x, weight, window_strides=(1, 1),
        padding=((pad, pad), (pad, pad)),
        rhs_dilation=(dilation, dilation),
        dimension_numbers=("NCHW", "OIHW", "NCHW"),
        precision=lax.Precision.HIGHEST)
    y = y + conv_bias[None, :, None, None]
    mean = jnp.mean(y, axis=(0, 2, 3), keepdims=True)
    var = jnp.mean((y - mean) ** 2, axis=(0, 2, 3), keepdims=True)   # biased, like BN
    y = (y - mean) / jnp.sqrt(var + eps) * gamma[None, :, None, None] \
        + beta[None, :, None, None]
    return jnp.maximum(y, 0.0)


# ----------------------------------------------------------------------------
if __name__ == "__main__":
    batch, in_channels, out_channels = 2, 4, 8
    H = W = 16
    kernel_size, dilation = 3, 2

    key = jax.random.PRNGKey(0)
    k1, k2, k3, k4, k5 = jax.random.split(key, 5)

    x = jax.random.normal(k1, (batch, in_channels, H, W), jnp.float32)
    weight = jax.random.normal(
        k2, (out_channels, in_channels, kernel_size, kernel_size), jnp.float32) * 0.1
    conv_bias = jax.random.normal(k3, (out_channels,), jnp.float32) * 0.1
    gamma = 0.5 + jax.random.uniform(k4, (out_channels,), jnp.float32)
    beta = jax.random.normal(k5, (out_channels,), jnp.float32) * 0.1

    out = atrous_convolution_forward(x, weight, conv_bias, gamma, beta,
                                     dilation=dilation)
    out = jax.block_until_ready(out)
    assert out.shape == (batch, out_channels, H, W), out.shape

    # Tight check: reference fed with bf16-quantized conv operands — matches the
    # kernel's bf16 MXU inputs + f32 accumulation up to summation order.
    x_q = x.astype(jnp.bfloat16).astype(jnp.float32)
    w_q = weight.astype(jnp.bfloat16).astype(jnp.float32)
    ref_q = reference_forward(x_q, w_q, conv_bias, gamma, beta, dilation=dilation)
    err_q = float(jnp.max(jnp.abs(out - ref_q)))
    assert err_q < 2e-3, f"mismatch vs bf16-matched reference, max abs err = {err_q}"

    # Loose check vs the full-f32 reference; the gap is bf16 operand rounding only.
    # (Use compute_dtype=jnp.float32 in the wrapper to recover <1e-5 agreement.)
    ref = reference_forward(x, weight, conv_bias, gamma, beta, dilation=dilation)
    err = float(jnp.max(jnp.abs(out - ref)))
    assert err < 5e-2, f"mismatch vs f32 reference, max abs err = {err}"

    print("KERNEL_OK")
</pallas_src>

<mosaic_0001>
module attributes {stable_mosaic.version = 11 : i64} {
  func.func @_fused_atrous_bn_relu_kernel(%arg0: i32, %arg1: i32, %arg2: memref<1x4x512xbf16, #tpu.memory_space<vmem>>, %arg3: memref<9x8x4xbf16, #tpu.memory_space<vmem>>, %arg4: memref<8x1xf32, #tpu.memory_space<vmem>>, %arg5: memref<8x1xf32, #tpu.memory_space<vmem>>, %arg6: memref<8x1xf32, #tpu.memory_space<vmem>>, %arg7: memref<1x384xf32, #tpu.memory_space<vmem>>, %arg8: memref<1x8x384xf32, #tpu.memory_space<vmem>>, %arg9: memref<8x1xf32, #tpu.memory_space<vmem>>, %arg10: memref<8x1xf32, #tpu.memory_space<vmem>>, %arg11: memref<8x1xf32, #tpu.memory_space<vmem>>, %arg12: memref<8x1xf32, #tpu.memory_space<vmem>>) attributes {dimension_semantics = [#tpu.dimension_semantics<arbitrary>, #tpu.dimension_semantics<arbitrary>], iteration_bounds = array<i64: 2, 2>, scalar_prefetch = 0 : i64, scratch_operands = 4 : i64, tpu.core_type = #tpu.core_type<tc>, window_params = [{transform_indices = @transform_0, window_bounds = array<i64: 1, 4, 512>}, {pipeline_mode = #tpu.pipeline_mode<synchronous>, transform_indices = @transform_1, window_bounds = array<i64: 9, 8, 4>}, {pipeline_mode = #tpu.pipeline_mode<synchronous>, transform_indices = @transform_2, window_bounds = array<i64: 8, 1>}, {pipeline_mode = #tpu.pipeline_mode<synchronous>, transform_indices = @transform_3, window_bounds = array<i64: 8, 1>}, {pipeline_mode = #tpu.pipeline_mode<synchronous>, transform_indices = @transform_4, window_bounds = array<i64: 8, 1>}, {pipeline_mode = #tpu.pipeline_mode<synchronous>, transform_indices = @transform_5, window_bounds = array<i64: 1, 384>}, {transform_indices = @transform_6, window_bounds = array<i64: 1, 8, 384>}]} {
    %c0_i32 = arith.constant 0 : i32
    %0 = arith.cmpi eq, %arg0, %c0_i32 : i32
    %c0_i32_0 = arith.constant 0 : i32
    %1 = arith.cmpi eq, %arg1, %c0_i32_0 : i32
    %2 = arith.andi %0, %1 : i1
    %3 = arith.extui %2 : i1 to i32
    %c0_i32_1 = arith.constant 0 : i32
    %4 = arith.cmpi ne, %3, %c0_i32_1 : i32
    scf.if %4 {
      %cst = arith.constant 0.000000e+00 : f32
      %16 = vector.broadcast %cst : f32 to vector<8x1xf32>
      %c0 = arith.constant 0 : index
      %c0_8 = arith.constant 0 : index
      %17 = vector.load %arg9[%c0, %c0_8] : memref<8x1xf32, #tpu.memory_space<vmem>>, vector<8x1xf32>
      tpu.vector_store %arg9[%c0, %c0_8], %16 {strides = array<i32>} : memref<8x1xf32, #tpu.memory_space<vmem>>, vector<8x1xf32>,
      %cst_9 = arith.constant 0.000000e+00 : f32
      %18 = vector.broadcast %cst_9 : f32 to vector<8x1xf32>
      %c0_10 = arith.constant 0 : index
      %c0_11 = arith.constant 0 : index
      %19 = vector.load %arg10[%c0_10, %c0_11] : memref<8x1xf32, #tpu.memory_space<vmem>>, vector<8x1xf32>
      tpu.vector_store %arg10[%c0_10, %c0_11], %18 {strides = array<i32>} : memref<8x1xf32, #tpu.memory_space<vmem>>, vector<8x1xf32>,
    } else {
    }
    %c0_i32_2 = arith.constant 0 : i32
    %5 = arith.cmpi eq, %arg0, %c0_i32_2 : i32
    %6 = arith.extui %5 : i1 to i32
    %c0_i32_3 = arith.constant 0 : i32
    %7 = arith.cmpi ne, %6, %c0_i32_3 : i32
    scf.if %7 {
      %c0 = arith.constant 0 : index
      %c0_8 = arith.constant 0 : index
      %c0_9 = arith.constant 0 : index
      %16 = vector.load %arg2[%c0, %c0_8, %c0_9] : memref<1x4x512xbf16, #tpu.memory_space<vmem>>, vector<1x4x384xbf16>
      %17 = vector.shape_cast %16 : vector<1x4x384xbf16> to vector<4x384xbf16>
      %c0_10 = arith.constant 0 : index
      %c0_11 = arith.constant 0 : index
      %c0_12 = arith.constant 0 : index
      %18 = vector.load %arg3[%c0_10, %c0_11, %c0_12] : memref<9x8x4xbf16, #tpu.memory_space<vmem>>, vector<1x8x4xbf16>
      %19 = vector.shape_cast %18 : vector<1x8x4xbf16> to vector<8x4xbf16>
      %cst = arith.constant dense<0.000000e+00> : vector<8x384xf32>
      %20 = tpu.matmul %19, %17, %cst {dimension_numbers = #tpu.dot_dimension_numbers<[1], [0], [0], [1], [0, 0, 1, 1], [], []>} : vector<8x4xbf16>, vector<4x384xbf16>, vector<8x384xf32> -> vector<8x384xf32>
      %c0_13 = arith.constant 0 : index
      %c0_14 = arith.constant 0 : index
      %c2 = arith.constant 2 : index
      %21 = vector.load %arg2[%c0_13, %c0_14, %c2] : memref<1x4x512xbf16, #tpu.memory_space<vmem>>, vector<1x4x384xbf16>
      %22 = vector.shape_cast %21 : vector<1x4x384xbf16> to vector<4x384xbf16>
      %c1 = arith.constant 1 : index
      %c0_15 = arith.constant 0 : index
      %c0_16 = arith.constant 0 : index
      %23 = vector.load %arg3[%c1, %c0_15, %c0_16] : memref<9x8x4xbf16, #tpu.memory_space<vmem>>, vector<1x8x4xbf16>
      %24 = vector.shape_cast %23 : vector<1x8x4xbf16> to vector<8x4xbf16>
      %cst_17 = arith.constant dense<0.000000e+00> : vector<8x384xf32>
      %25 = tpu.matmul %24, %22, %cst_17 {dimension_numbers = #tpu.dot_dimension_numbers<[1], [0], [0], [1], [0, 0, 1, 1], [], []>} : vector<8x4xbf16>, vector<4x384xbf16>, vector<8x384xf32> -> vector<8x384xf32>
      %26 = arith.addf %20, %25 : vector<8x384xf32>
      %c0_18 = arith.constant 0 : index
      %c0_19 = arith.constant 0 : index
      %c4 = arith.constant 4 : index
      %27 = vector.load %arg2[%c0_18, %c0_19, %c4] : memref<1x4x512xbf16, #tpu.memory_space<vmem>>, vector<1x4x384xbf16>
      %28 = vector.shape_cast %27 : vector<1x4x384xbf16> to vector<4x384xbf16>
      %c2_20 = arith.constant 2 : index
      %c0_21 = arith.constant 0 : index
      %c0_22 = arith.constant 0 : index
      %29 = vector.load %arg3[%c2_20, %c0_21, %c0_22] : memref<9x8x4xbf16, #tpu.memory_space<vmem>>, vector<1x8x4xbf16>
      %30 = vector.shape_cast %29 : vector<1x8x4xbf16> to vector<8x4xbf16>
      %cst_23 = arith.constant dense<0.000000e+00> : vector<8x384xf32>
      %31 = tpu.matmul %30, %28, %cst_23 {dimension_numbers = #tpu.dot_dimension_numbers<[1], [0], [0], [1], [0, 0, 1, 1], [], []>} : vector<8x4xbf16>, vector<4x384xbf16>, vector<8x384xf32> -> vector<8x384xf32>
      %32 = arith.addf %26, %31 : vector<8x384xf32>
      %c0_24 = arith.constant 0 : index
      %c0_25 = arith.constant 0 : index
      %c40 = arith.constant 40 : index
      %33 = vector.load %arg2[%c0_24, %c0_25, %c40] : memref<1x4x512xbf16, #tpu.memory_space<vmem>>, vector<1x4x384xbf16>
      %34 = vector.shape_cast %33 : vector<1x4x384xbf16> to vector<4x384xbf16>
      %c3 = arith.constant 3 : index
      %c0_26 = arith.constant 0 : index
      %c0_27 = arith.constant 0 : index
      %35 = vector.load %arg3[%c3, %c0_26, %c0_27] : memref<9x8x4xbf16, #tpu.memory_space<vmem>>, vector<1x8x4xbf16>
      %36 = vector.shape_cast %35 : vector<1x8x4xbf16> to vector<8x4xbf16>
      %cst_28 = arith.constant dense<0.000000e+00> : vector<8x384xf32>
      %37 = tpu.matmul %36, %34, %cst_28 {dimension_numbers = #tpu.dot_dimension_numbers<[1], [0], [0], [1], [0, 0, 1, 1], [], []>} : vector<8x4xbf16>, vector<4x384xbf16>, vector<8x384xf32> -> vector<8x384xf32>
      %38 = arith.addf %32, %37 : vector<8x384xf32>
      %c0_29 = arith.constant 0 : index
      %c0_30 = arith.constant 0 : index
      %c42 = arith.constant 42 : index
      %39 = vector.load %arg2[%c0_29, %c0_30, %c42] : memref<1x4x512xbf16, #tpu.memory_space<vmem>>, vector<1x4x384xbf16>
      %40 = vector.shape_cast %39 : vector<1x4x384xbf16> to vector<4x384xbf16>
      %c4_31 = arith.constant 4 : index
      %c0_32 = arith.constant 0 : index
      %c0_33 = arith.constant 0 : index
      %41 = vector.load %arg3[%c4_31, %c0_32, %c0_33] : memref<9x8x4xbf16, #tpu.memory_space<vmem>>, vector<1x8x4xbf16>
      %42 = vector.shape_cast %41 : vector<1x8x4xbf16> to vector<8x4xbf16>
      %cst_34 = arith.constant dense<0.000000e+00> : vector<8x384xf32>
      %43 = tpu.matmul %42, %40, %cst_34 {dimension_numbers = #tpu.dot_dimension_numbers<[1], [0], [0], [1], [0, 0, 1, 1], [], []>} : vector<8x4xbf16>, vector<4x384xbf16>, vector<8x384xf32> -> vector<8x384xf32>
      %44 = arith.addf %38, %43 : vector<8x384xf32>
      %c0_35 = arith.constant 0 : index
      %c0_36 = arith.constant 0 : index
      %c44 = arith.constant 44 : index
      %45 = vector.load %arg2[%c0_35, %c0_36, %c44] : memref<1x4x512xbf16, #tpu.memory_space<vmem>>, vector<1x4x384xbf16>
      %46 = vector.shape_cast %45 : vector<1x4x384xbf16> to vector<4x384xbf16>
      %c5 = arith.constant 5 : index
      %c0_37 = arith.constant 0 : index
      %c0_38 = arith.constant 0 : index
      %47 = vector.load %arg3[%c5, %c0_37, %c0_38] : memref<9x8x4xbf16, #tpu.memory_space<vmem>>, vector<1x8x4xbf16>
      %48 = vector.shape_cast %47 : vector<1x8x4xbf16> to vector<8x4xbf16>
      %cst_39 = arith.constant dense<0.000000e+00> : vector<8x384xf32>
      %49 = tpu.matmul %48, %46, %cst_39 {dimension_numbers = #tpu.dot_dimension_numbers<[1], [0], [0], [1], [0, 0, 1, 1], [], []>} : vector<8x4xbf16>, vector<4x384xbf16>, vector<8x384xf32> -> vector<8x384xf32>
      %50 = arith.addf %44, %49 : vector<8x384xf32>
      %c0_40 = arith.constant 0 : index
      %c0_41 = arith.constant 0 : index
      %c80 = arith.constant 80 : index
      %51 = vector.load %arg2[%c0_40, %c0_41, %c80] : memref<1x4x512xbf16, #tpu.memory_space<vmem>>, vector<1x4x384xbf16>
      %52 = vector.shape_cast %51 : vector<1x4x384xbf16> to vector<4x384xbf16>
      %c6 = arith.constant 6 : index
      %c0_42 = arith.constant 0 : index
      %c0_43 = arith.constant 0 : index
      %53 = vector.load %arg3[%c6, %c0_42, %c0_43] : memref<9x8x4xbf16, #tpu.memory_space<vmem>>, vector<1x8x4xbf16>
      %54 = vector.shape_cast %53 : vector<1x8x4xbf16> to vector<8x4xbf16>
      %cst_44 = arith.constant dense<0.000000e+00> : vector<8x384xf32>
      %55 = tpu.matmul %54, %52, %cst_44 {dimension_numbers = #tpu.dot_dimension_numbers<[1], [0], [0], [1], [0, 0, 1, 1], [], []>} : vector<8x4xbf16>, vector<4x384xbf16>, vector<8x384xf32> -> vector<8x384xf32>
      %56 = arith.addf %50, %55 : vector<8x384xf32>
      %c0_45 = arith.constant 0 : index
      %c0_46 = arith.constant 0 : index
      %c82 = arith.constant 82 : index
      %57 = vector.load %arg2[%c0_45, %c0_46, %c82] : memref<1x4x512xbf16, #tpu.memory_space<vmem>>, vector<1x4x384xbf16>
      %58 = vector.shape_cast %57 : vector<1x4x384xbf16> to vector<4x384xbf16>
      %c7 = arith.constant 7 : index
      %c0_47 = arith.constant 0 : index
      %c0_48 = arith.constant 0 : index
      %59 = vector.load %arg3[%c7, %c0_47, %c0_48] : memref<9x8x4xbf16, #tpu.memory_space<vmem>>, vector<1x8x4xbf16>
      %60 = vector.shape_cast %59 : vector<1x8x4xbf16> to vector<8x4xbf16>
      %cst_49 = arith.constant dense<0.000000e+00> : vector<8x384xf32>
      %61 = tpu.matmul %60, %58, %cst_49 {dimension_numbers = #tpu.dot_dimension_numbers<[1], [0], [0], [1], [0, 0, 1, 1], [], []>} : vector<8x4xbf16>, vector<4x384xbf16>, vector<8x384xf32> -> vector<8x384xf32>
      %62 = arith.addf %56, %61 : vector<8x384xf32>
      %c0_50 = arith.constant 0 : index
      %c0_51 = arith.constant 0 : index
      %c84 = arith.constant 84 : index
      %63 = vector.load %arg2[%c0_50, %c0_51, %c84] : memref<1x4x512xbf16, #tpu.memory_space<vmem>>, vector<1x4x384xbf16>
      %64 = vector.shape_cast %63 : vector<1x4x384xbf16> to vector<4x384xbf16>
      %c8 = arith.constant 8 : index
      %c0_52 = arith.constant 0 : index
      %c0_53 = arith.constant 0 : index
      %65 = vector.load %arg3[%c8, %c0_52, %c0_53] : memref<9x8x4xbf16, #tpu.memory_space<vmem>>, vector<1x8x4xbf16>
      %66 = vector.shape_cast %65 : vector<1x8x4xbf16> to vector<8x4xbf16>
      %cst_54 = arith.constant dense<0.000000e+00> : vector<8x384xf32>
      %67 = tpu.matmul %66, %64, %cst_54 {dimension_numbers = #tpu.dot_dimension_numbers<[1], [0], [0], [1], [0, 0, 1, 1], [], []>} : vector<8x4xbf16>, vector<4x384xbf16>, vector<8x384xf32> -> vector<8x384xf32>
      %68 = arith.addf %62, %67 : vector<8x384xf32>
      %c0_55 = arith.constant 0 : index
      %c0_56 = arith.constant 0 : index
      %69 = vector.load %arg4[%c0_55, %c0_56] : memref<8x1xf32, #tpu.memory_space<vmem>>, vector<8x1xf32>
      %70 = vector.broadcast %69 : vector<8x1xf32> to vector<8x384xf32>
      %71 = arith.addf %68, %70 : vector<8x384xf32>
      %c0_57 = arith.constant 0 : index
      %c0_58 = arith.constant 0 : index
      %72 = vector.load %arg7[%c0_57, %c0_58] : memref<1x384xf32, #tpu.memory_space<vmem>>, vector<1x384xf32>
      %73 = vector.broadcast %72 : vector<1x384xf32> to vector<8x384xf32>
      %74 = arith.mulf %71, %73 : vector<8x384xf32>
      %c0_59 = arith.constant 0 : index
      %c0_60 = arith.constant 0 : index
      %75 = vector.load %arg9[%c0_59, %c0_60] : memref<8x1xf32, #tpu.memory_space<vmem>>, vector<8x1xf32>
      %cst_61 = arith.constant dense<0.000000e+00> : vector<8xf32>
      %76 = vector.multi_reduction <add>, %74, %cst_61 [1] : vector<8x384xf32> to vector<8xf32>
      %77 = vector.shape_cast %76 : vector<8xf32> to vector<8x1xf32>
      %78 = arith.addf %75, %77 : vector<8x1xf32>
      %c0_62 = arith.constant 0 : index
      %c0_63 = arith.constant 0 : index
      %79 = vector.load %arg9[%c0_62, %c0_63] : memref<8x1xf32, #tpu.memory_space<vmem>>, vector<8x1xf32>
      tpu.vector_store %arg9[%c0_62, %c0_63], %78 {strides = array<i32>} : memref<8x1xf32, #tpu.memory_space<vmem>>, vector<8x1xf32>,
      %c0_64 = arith.constant 0 : index
      %c0_65 = arith.constant 0 : index
      %80 = vector.load %arg10[%c0_64, %c0_65] : memref<8x1xf32, #tpu.memory_space<vmem>>, vector<8x1xf32>
      %81 = arith.mulf %74, %74 : vector<8x384xf32>
      %cst_66 = arith.constant dense<0.000000e+00> : vector<8xf32>
      %82 = vector.multi_reduction <add>, %81, %cst_66 [1] : vector<8x384xf32> to vector<8xf32>
      %83 = vector.shape_cast %82 : vector<8xf32> to vector<8x1xf32>
      %84 = arith.addf %80, %83 : vector<8x1xf32>
      %c0_67 = arith.constant 0 : index
      %c0_68 = arith.constant 0 : index
      %85 = vector.load %arg10[%c0_67, %c0_68] : memref<8x1xf32, #tpu.memory_space<vmem>>, vector<8x1xf32>
      tpu.vector_store %arg10[%c0_67, %c0_68], %84 {strides = array<i32>} : memref<8x1xf32, #tpu.memory_space<vmem>>, vector<8x1xf32>,
    } else {
    }
    %c1_i32 = arith.constant 1 : i32
    %8 = arith.cmpi eq, %arg0, %c1_i32 : i32
    %c0_i32_4 = arith.constant 0 : i32
    %9 = arith.cmpi eq, %arg1, %c0_i32_4 : i32
    %10 = arith.andi %8, %9 : i1
    %11 = arith.extui %10 : i1 to i32
    %c0_i32_5 = arith.constant 0 : i32
    %12 = arith.cmpi ne, %11, %c0_i32_5 : i32
    scf.if %12 {
      %c0 = arith.constant 0 : index
      %c0_8 = arith.constant 0 : index
      %16 = vector.load %arg9[%c0, %c0_8] : memref<8x1xf32, #tpu.memory_space<vmem>>, vector<8x1xf32>
      %cst = arith.constant 0.001953125 : f32
      %17 = vector.broadcast %cst : f32 to vector<8x1xf32>
      %18 = arith.mulf %16, %17 : vector<8x1xf32>
      %c0_9 = arith.constant 0 : index
      %c0_10 = arith.constant 0 : index
      %19 = vector.load %arg10[%c0_9, %c0_10] : memref<8x1xf32, #tpu.memory_space<vmem>>, vector<8x1xf32>
      %cst_11 = arith.constant 0.001953125 : f32
      %20 = vector.broadcast %cst_11 : f32 to vector<8x1xf32>
      %21 = arith.mulf %19, %20 : vector<8x1xf32>
      %22 = arith.mulf %18, %18 : vector<8x1xf32>
      %23 = arith.subf %21, %22 : vector<8x1xf32>
      %cst_12 = arith.constant 0.000000e+00 : f32
      %24 = vector.broadcast %cst_12 : f32 to vector<8x1xf32>
      %25 = arith.maximumf %23, %24 : vector<8x1xf32>
      %cst_13 = arith.constant 9.99999974E-6 : f32
      %26 = vector.broadcast %cst_13 : f32 to vector<8x1xf32>
      %27 = arith.addf %25, %26 : vector<8x1xf32>
      %28 = math.rsqrt %27 : vector<8x1xf32>
      %c0_14 = arith.constant 0 : index
      %c0_15 = arith.constant 0 : index
      %29 = vector.load %arg5[%c0_14, %c0_15] : memref<8x1xf32, #tpu.memory_space<vmem>>, vector<8x1xf32>
      %30 = arith.mulf %29, %28 : vector<8x1xf32>
      %c0_16 = arith.constant 0 : index
      %c0_17 = arith.constant 0 : index
      %31 = vector.load %arg11[%c0_16, %c0_17] : memref<8x1xf32, #tpu.memory_space<vmem>>, vector<8x1xf32>
      tpu.vector_store %arg11[%c0_16, %c0_17], %30 {strides = array<i32>} : memref<8x1xf32, #tpu.memory_space<vmem>>, vector<8x1xf32>,
      %c0_18 = arith.constant 0 : index
      %c0_19 = arith.constant 0 : index
      %32 = vector.load %arg6[%c0_18, %c0_19] : memref<8x1xf32, #tpu.memory_space<vmem>>, vector<8x1xf32>
      %33 = arith.mulf %18, %30 : vector<8x1xf32>
      %34 = arith.subf %32, %33 : vector<8x1xf32>
      %c0_20 = arith.constant 0 : index
      %c0_21 = arith.constant 0 : index
      %35 = vector.load %arg12[%c0_20, %c0_21] : memref<8x1xf32, #tpu.memory_space<vmem>>, vector<8x1xf32>
      tpu.vector_store %arg12[%c0_20, %c0_21], %34 {strides = array<i32>} : memref<8x1xf32, #tpu.memory_space<vmem>>, vector<8x1xf32>,
    } else {
    }
    %c1_i32_6 = arith.constant 1 : i32
    %13 = arith.cmpi eq, %arg0, %c1_i32_6 : i32
    %14 = arith.extui %13 : i1 to i32
    %c0_i32_7 = arith.constant 0 : i32
    %15 = arith.cmpi ne, %14, %c0_i32_7 : i32
    scf.if %15 {
      %c0 = arith.constant 0 : index
      %c0_8 = arith.constant 0 : index
      %c0_9 = arith.constant 0 : index
      %16 = vector.load %arg2[%c0, %c0_8, %c0_9] : memref<1x4x512xbf16, #tpu.memory_space<vmem>>, vector<1x4x384xbf16>
      %17 = vector.shape_cast %16 : vector<1x4x384xbf16> to vector<4x384xbf16>
      %c0_10 = arith.constant 0 : index
      %c0_11 = arith.constant 0 : index
      %c0_12 = arith.constant 0 : index
      %18 = vector.load %arg3[%c0_10, %c0_11, %c0_12] : memref<9x8x4xbf16, #tpu.memory_space<vmem>>, vector<1x8x4xbf16>
      %19 = vector.shape_cast %18 : vector<1x8x4xbf16> to vector<8x4xbf16>
      %cst = arith.constant dense<0.000000e+00> : vector<8x384xf32>
      %20 = tpu.matmul %19, %17, %cst {dimension_numbers = #tpu.dot_dimension_numbers<[1], [0], [0], [1], [0, 0, 1, 1], [], []>} : vector<8x4xbf16>, vector<4x384xbf16>, vector<8x384xf32> -> vector<8x384xf32>
      %c0_13 = arith.constant 0 : index
      %c0_14 = arith.constant 0 : index
      %c2 = arith.constant 2 : index
      %21 = vector.load %arg2[%c0_13, %c0_14, %c2] : memref<1x4x512xbf16, #tpu.memory_space<vmem>>, vector<1x4x384xbf16>
      %22 = vector.shape_cast %21 : vector<1x4x384xbf16> to vector<4x384xbf16>
      %c1 = arith.constant 1 : index
      %c0_15 = arith.constant 0 : index
      %c0_16 = arith.constant 0 : index
      %23 = vector.load %arg3[%c1, %c0_15, %c0_16] : memref<9x8x4xbf16, #tpu.memory_space<vmem>>, vector<1x8x4xbf16>
      %24 = vector.shape_cast %23 : vector<1x8x4xbf16> to vector<8x4xbf16>
      %cst_17 = arith.constant dense<0.000000e+00> : vector<8x384xf32>
      %25 = tpu.matmul %24, %22, %cst_17 {dimension_numbers = #tpu.dot_dimension_numbers<[1], [0], [0], [1], [0, 0, 1, 1], [], []>} : vector<8x4xbf16>, vector<4x384xbf16>, vector<8x384xf32> -> vector<8x384xf32>
      %26 = arith.addf %20, %25 : vector<8x384xf32>
      %c0_18 = arith.constant 0 : index
      %c0_19 = arith.constant 0 : index
      %c4 = arith.constant 4 : index
      %27 = vector.load %arg2[%c0_18, %c0_19, %c4] : memref<1x4x512xbf16, #tpu.memory_space<vmem>>, vector<1x4x384xbf16>
      %28 = vector.shape_cast %27 : vector<1x4x384xbf16> to vector<4x384xbf16>
      %c2_20 = arith.constant 2 : index
      %c0_21 = arith.constant 0 : index
      %c0_22 = arith.constant 0 : index
      %29 = vector.load %arg3[%c2_20, %c0_21, %c0_22] : memref<9x8x4xbf16, #tpu.memory_space<vmem>>, vector<1x8x4xbf16>
      %30 = vector.shape_cast %29 : vector<1x8x4xbf16> to vector<8x4xbf16>
      %cst_23 = arith.constant dense<0.000000e+00> : vector<8x384xf32>
      %31 = tpu.matmul %30, %28, %cst_23 {dimension_numbers = #tpu.dot_dimension_numbers<[1], [0], [0], [1], [0, 0, 1, 1], [], []>} : vector<8x4xbf16>, vector<4x384xbf16>, vector<8x384xf32> -> vector<8x384xf32>
      %32 = arith.addf %26, %31 : vector<8x384xf32>
      %c0_24 = arith.constant 0 : index
      %c0_25 = arith.constant 0 : index
      %c40 = arith.constant 40 : index
      %33 = vector.load %arg2[%c0_24, %c0_25, %c40] : memref<1x4x512xbf16, #tpu.memory_space<vmem>>, vector<1x4x384xbf16>
      %34 = vector.shape_cast %33 : vector<1x4x384xbf16> to vector<4x384xbf16>
      %c3 = arith.constant 3 : index
      %c0_26 = arith.constant 0 : index
      %c0_27 = arith.constant 0 : index
      %35 = vector.load %arg3[%c3, %c0_26, %c0_27] : memref<9x8x4xbf16, #tpu.memory_space<vmem>>, vector<1x8x4xbf16>
      %36 = vector.shape_cast %35 : vector<1x8x4xbf16> to vector<8x4xbf16>
      %cst_28 = arith.constant dense<0.000000e+00> : vector<8x384xf32>
      %37 = tpu.matmul %36, %34, %cst_28 {dimension_numbers = #tpu.dot_dimension_numbers<[1], [0], [0], [1], [0, 0, 1, 1], [], []>} : vector<8x4xbf16>, vector<4x384xbf16>, vector<8x384xf32> -> vector<8x384xf32>
      %38 = arith.addf %32, %37 : vector<8x384xf32>
      %c0_29 = arith.constant 0 : index
      %c0_30 = arith.constant 0 : index
      %c42 = arith.constant 42 : index
      %39 = vector.load %arg2[%c0_29, %c0_30, %c42] : memref<1x4x512xbf16, #tpu.memory_space<vmem>>, vector<1x4x384xbf16>
      %40 = vector.shape_cast %39 : vector<1x4x384xbf16> to vector<4x384xbf16>
      %c4_31 = arith.constant 4 : index
      %c0_32 = arith.constant 0 : index
      %c0_33 = arith.constant 0 : index
      %41 = vector.load %arg3[%c4_31, %c0_32, %c0_33] : memref<9x8x4xbf16, #tpu.memory_space<vmem>>, vector<1x8x4xbf16>
      %42 = vector.shape_cast %41 : vector<1x8x4xbf16> to vector<8x4xbf16>
      %cst_34 = arith.constant dense<0.000000e+00> : vector<8x384xf32>
      %43 = tpu.matmul %42, %40, %cst_34 {dimension_numbers = #tpu.dot_dimension_numbers<[1], [0], [0], [1], [0, 0, 1, 1], [], []>} : vector<8x4xbf16>, vector<4x384xbf16>, vector<8x384xf32> -> vector<8x384xf32>
      %44 = arith.addf %38, %43 : vector<8x384xf32>
      %c0_35 = arith.constant 0 : index
      %c0_36 = arith.constant 0 : index
      %c44 = arith.constant 44 : index
      %45 = vector.load %arg2[%c0_35, %c0_36, %c44] : memref<1x4x512xbf16, #tpu.memory_space<vmem>>, vector<1x4x384xbf16>
      %46 = vector.shape_cast %45 : vector<1x4x384xbf16> to vector<4x384xbf16>
      %c5 = arith.constant 5 : index
      %c0_37 = arith.constant 0 : index
      %c0_38 = arith.constant 0 : index
      %47 = vector.load %arg3[%c5, %c0_37, %c0_38] : memref<9x8x4xbf16, #tpu.memory_space<vmem>>, vector<1x8x4xbf16>
      %48 = vector.shape_cast %47 : vector<1x8x4xbf16> to vector<8x4xbf16>
      %cst_39 = arith.constant dense<0.000000e+00> : vector<8x384xf32>
      %49 = tpu.matmul %48, %46, %cst_39 {dimension_numbers = #tpu.dot_dimension_numbers<[1], [0], [0], [1], [0, 0, 1, 1], [], []>} : vector<8x4xbf16>, vector<4x384xbf16>, vector<8x384xf32> -> vector<8x384xf32>
      %50 = arith.addf %44, %49 : vector<8x384xf32>
      %c0_40 = arith.constant 0 : index
      %c0_41 = arith.constant 0 : index
      %c80 = arith.constant 80 : index
      %51 = vector.load %arg2[%c0_40, %c0_41, %c80] : memref<1x4x512xbf16, #tpu.memory_space<vmem>>, vector<1x4x384xbf16>
      %52 = vector.shape_cast %51 : vector<1x4x384xbf16> to vector<4x384xbf16>
      %c6 = arith.constant 6 : index
      %c0_42 = arith.constant 0 : index
      %c0_43 = arith.constant 0 : index
      %53 = vector.load %arg3[%c6, %c0_42, %c0_43] : memref<9x8x4xbf16, #tpu.memory_space<vmem>>, vector<1x8x4xbf16>
      %54 = vector.shape_cast %53 : vector<1x8x4xbf16> to vector<8x4xbf16>
      %cst_44 = arith.constant dense<0.000000e+00> : vector<8x384xf32>
      %55 = tpu.matmul %54, %52, %cst_44 {dimension_numbers = #tpu.dot_dimension_numbers<[1], [0], [0], [1], [0, 0, 1, 1], [], []>} : vector<8x4xbf16>, vector<4x384xbf16>, vector<8x384xf32> -> vector<8x384xf32>
      %56 = arith.addf %50, %55 : vector<8x384xf32>
      %c0_45 = arith.constant 0 : index
      %c0_46 = arith.constant 0 : index
      %c82 = arith.constant 82 : index
      %57 = vector.load %arg2[%c0_45, %c0_46, %c82] : memref<1x4x512xbf16, #tpu.memory_space<vmem>>, vector<1x4x384xbf16>
      %58 = vector.shape_cast %57 : vector<1x4x384xbf16> to vector<4x384xbf16>
      %c7 = arith.constant 7 : index
      %c0_47 = arith.constant 0 : index
      %c0_48 = arith.constant 0 : index
      %59 = vector.load %arg3[%c7, %c0_47, %c0_48] : memref<9x8x4xbf16, #tpu.memory_space<vmem>>, vector<1x8x4xbf16>
      %60 = vector.shape_cast %59 : vector<1x8x4xbf16> to vector<8x4xbf16>
      %cst_49 = arith.constant dense<0.000000e+00> : vector<8x384xf32>
      %61 = tpu.matmul %60, %58, %cst_49 {dimension_numbers = #tpu.dot_dimension_numbers<[1], [0], [0], [1], [0, 0, 1, 1], [], []>} : vector<8x4xbf16>, vector<4x384xbf16>, vector<8x384xf32> -> vector<8x384xf32>
      %62 = arith.addf %56, %61 : vector<8x384xf32>
      %c0_50 = arith.constant 0 : index
      %c0_51 = arith.constant 0 : index
      %c84 = arith.constant 84 : index
      %63 = vector.load %arg2[%c0_50, %c0_51, %c84] : memref<1x4x512xbf16, #tpu.memory_space<vmem>>, vector<1x4x384xbf16>
      %64 = vector.shape_cast %63 : vector<1x4x384xbf16> to vector<4x384xbf16>
      %c8 = arith.constant 8 : index
      %c0_52 = arith.constant 0 : index
      %c0_53 = arith.constant 0 : index
      %65 = vector.load %arg3[%c8, %c0_52, %c0_53] : memref<9x8x4xbf16, #tpu.memory_space<vmem>>, vector<1x8x4xbf16>
      %66 = vector.shape_cast %65 : vector<1x8x4xbf16> to vector<8x4xbf16>
      %cst_54 = arith.constant dense<0.000000e+00> : vector<8x384xf32>
      %67 = tpu.matmul %66, %64, %cst_54 {dimension_numbers = #tpu.dot_dimension_numbers<[1], [0], [0], [1], [0, 0, 1, 1], [], []>} : vector<8x4xbf16>, vector<4x384xbf16>, vector<8x384xf32> -> vector<8x384xf32>
      %68 = arith.addf %62, %67 : vector<8x384xf32>
      %c0_55 = arith.constant 0 : index
      %c0_56 = arith.constant 0 : index
      %69 = vector.load %arg4[%c0_55, %c0_56] : memref<8x1xf32, #tpu.memory_space<vmem>>, vector<8x1xf32>
      %70 = vector.broadcast %69 : vector<8x1xf32> to vector<8x384xf32>
      %71 = arith.addf %68, %70 : vector<8x384xf32>
      %c0_57 = arith.constant 0 : index
      %c0_58 = arith.constant 0 : index
      %72 = vector.load %arg11[%c0_57, %c0_58] : memref<8x1xf32, #tpu.memory_space<vmem>>, vector<8x1xf32>
      %73 = vector.broadcast %72 : vector<8x1xf32> to vector<8x384xf32>
      %74 = arith.mulf %71, %73 : vector<8x384xf32>
      %c0_59 = arith.constant 0 : index
      %c0_60 = arith.constant 0 : index
      %75 = vector.load %arg12[%c0_59, %c0_60] : memref<8x1xf32, #tpu.memory_space<vmem>>, vector<8x1xf32>
      %76 = vector.broadcast %75 : vector<8x1xf32> to vector<8x384xf32>
      %77 = arith.addf %74, %76 : vector<8x384xf32>
      %cst_61 = arith.constant 0.000000e+00 : f32
      %78 = vector.broadcast %cst_61 : f32 to vector<8x384xf32>
      %79 = arith.maximumf %77, %78 : vector<8x384xf32>
      %c0_62 = arith.constant 0 : index
      %c0_63 = arith.constant 0 : index
      %c0_64 = arith.constant 0 : index
      %80 = vector.load %arg8[%c0_62, %c0_63, %c0_64] : memref<1x8x384xf32, #tpu.memory_space<vmem>>, vector<1x8x384xf32>
      %81 = vector.shape_cast %80 : vector<1x8x384xf32> to vector<8x384xf32>
      %82 = vector.shape_cast %79 : vector<8x384xf32> to vector<1x8x384xf32>
      tpu.vector_store %arg8[%c0_62, %c0_63, %c0_64], %82 {strides = array<i32>} : memref<1x8x384xf32, #tpu.memory_space<vmem>>, vector<1x8x384xf32>,
    } else {
    }
    return
  }
  func.func @transform_0(%arg0: i32, %arg1: i32) -> (i32, i32, i32) {
    %c0_i32 = arith.constant 0 : i32
    %c0_i32_0 = arith.constant 0 : i32
    %c0_i32_1 = arith.constant 0 : i32
    return %arg1, %c0_i32, %c0_i32_0 : i32, i32, i32
  }
  func.func @transform_1(%arg0: i32, %arg1: i32) -> (i32, i32, i32) {
    %c0_i32 = arith.constant 0 : i32
    %c0_i32_0 = arith.constant 0 : i32
    %c0_i32_1 = arith.constant 0 : i32
    %c0_i32_2 = arith.constant 0 : i32
    return %c0_i32, %c0_i32_0, %c0_i32_1 : i32, i32, i32
  }
  func.func @transform_2(%arg0: i32, %arg1: i32) -> (i32, i32) {
    %c0_i32 = arith.constant 0 : i32
    %c0_i32_0 = arith.constant 0 : i32
    %c0_i32_1 = arith.constant 0 : i32
    return %c0_i32, %c0_i32_0 : i32, i32
  }
  func.func @transform_3(%arg0: i32, %arg1: i32) -> (i32, i32) {
    %c0_i32 = arith.constant 0 : i32
    %c0_i32_0 = arith.constant 0 : i32
    %c0_i32_1 = arith.constant 0 : i32
    return %c0_i32, %c0_i32_0 : i32, i32
  }
  func.func @transform_4(%arg0: i32, %arg1: i32) -> (i32, i32) {
    %c0_i32 = arith.constant 0 : i32
    %c0_i32_0 = arith.constant 0 : i32
    %c0_i32_1 = arith.constant 0 : i32
    return %c0_i32, %c0_i32_0 : i32, i32
  }
  func.func @transform_5(%arg0: i32, %arg1: i32) -> (i32, i32) {
    %c0_i32 = arith.constant 0 : i32
    %c0_i32_0 = arith.constant 0 : i32
    %c0_i32_1 = arith.constant 0 : i32
    return %c0_i32, %c0_i32_0 : i32, i32
  }
  func.func @transform_6(%arg0: i32, %arg1: i32) -> (i32, i32, i32) {
    %0 = arith.muli %arg0, %arg1 : i32
    %c0_i32 = arith.constant 0 : i32
    %c0_i32_0 = arith.constant 0 : i32
    %c0_i32_1 = arith.constant 0 : i32
    return %0, %c0_i32, %c0_i32_0 : i32, i32, i32
  }
}

</mosaic_0001>

<llo_original>
// kernel: tpu_custom_call.1
$region0: #{tpu_custom_call.1}
  #allocation0 [shape = 'u32[]', space=smem, size = 0x4, offset = 0x4, fixed_abs, tag = 'smem constant byte address 0x4 - core index']
  #allocation1 [shape = 'u32[144,128]{1,0:T(1,128)}', space=vmem, size = 0x12000, scoped, tag = 'internal scratch']
  #allocation2 [shape = 'f32[8,1]{1,0:T(8,128)}', space=vmem, size = 0x1000, scoped, tag = 'scratch operand']
  #allocation3 [shape = 'f32[8,1]{1,0:T(8,128)}', space=vmem, size = 0x1000, scoped, tag = 'scratch operand']
  #allocation4 [shape = 'f32[8,1]{1,0:T(8,128)}', space=vmem, size = 0x1000, scoped, tag = 'scratch operand']
  #allocation5 [shape = 'f32[8,1]{1,0:T(8,128)}', space=vmem, size = 0x1000, scoped, tag = 'scratch operand']
  %s0 = inlined_call_operand.vmem [shape: bf16[2,4,512], index: 0, kind: input, shape index: {}]
  %s1 = inlined_call_operand.vmem [shape: bf16[9,8,4], index: 1, kind: input, shape index: {}]
  %s2 = inlined_call_operand.vmem [shape: f32[8,1], index: 2, kind: input, shape index: {}]
  %s3 = inlined_call_operand.vmem [shape: f32[8,1], index: 3, kind: input, shape index: {}]
  %s4 = inlined_call_operand.vmem [shape: f32[8,1], index: 4, kind: input, shape index: {}]
  %s5 = inlined_call_operand.vmem [shape: f32[1,384], index: 5, kind: input, shape index: {}]
  %s6 = inlined_call_operand.hbm [shape: f32[2,8,384], index: 6, kind: output, shape index: {}]
  %s7 = sld [smem:[#allocation0]]
  $region73: #{tpu_custom_call.1} parent=0
    _
  %s9 = ssub.s32 1, %s7
  %s10 = scalar_select 0, %s9, %s7
  $region1: #{tpu_custom_call.1} parent=0
    #allocation6 [shape = 'u8[24576]{0}', space=vmem, size = 0x6000, scoped, tag = 'output window, operand 0']
    #allocation7 [shape = 's32[2]{0}', space=sflag, size = 0x8, scoped, tag = 'scoped memory for tpu_custom_call.1']
    %11 = vsyncpa [#allocation7], 0
    %s12 = scalar_lea.sflag [#allocation7], 1
    %13 = vsyncpa %s12, 0
    loop: start=0, step=1, limit=6
    $region2: #{tpu_custom_call.1} parent=1 // loop_pre_header
      _
    $region3: #{tpu_custom_call.1} parent=1 // loop_header
      %s15 = sphi 0, %s19
      %p16 = scmp.ge.s32.totalorder %s15, 6
      %s22 = sphi 0, %s34
      %s23 = sphi 0, %s30
      %s24 = sphi 0, %s22
      %s25 = sphi 0, %s23
      %s26 = sphi 0, %s24
      %s27 = sphi 0, %s25
      %s37 = sphi 0, %s39
      %s40 = sphi 0, %s37
      %s41 = sphi 0, %s40
      %s57 = sphi 0, %s41
      %s61 = sphi 0, %s61
      %s63 = sphi 0, %s61
      %s64 = sphi 0, %s63
      %s78 = sphi 0, %s64
      %s82 = sphi 0, %s82
      %s84 = sphi 0, %s82
      %s85 = sphi 0, %s84
      %s99 = sphi 0, %s85
      %s103 = sphi 0, %s103
      %s105 = sphi 0, %s103
      %s106 = sphi 0, %s105
      %s120 = sphi 0, %s106
      %s124 = sphi 0, %s124
      %s126 = sphi 0, %s124
      %s127 = sphi 0, %s126
      %s141 = sphi 0, %s127
      %s145 = sphi 0, %s145
      %s147 = sphi 0, %s145
      %s148 = sphi 0, %s147
      %s162 = sphi 0, %s148
      %s170 = sphi 0, %s172
      %s173 = sphi 0, %s170
      %s174 = sphi 0, %s173
      %s190 = sphi 0, %s174
    $region4: #{tpu_custom_call.1} parent=1 // loop_header_branch
      %18 = sbr.rel (%p16) target = $region8
    $region5: #{tpu_custom_call.1} parent=1 // loop_body
      %s20 = ssub.s32 %s15, 1
      %s21 = ssub.s32 %s15, 2
      %s28 = sadd.s32 1, %s23
      %p29 = scmp.ge.s32.totalorder %s28, 2
      %s30 = scalar_select %p29, 0, %s28
      %s31 = sadd.s32 1, %s22
      %s32 = scalar_select %p29, %s31, %s22
      %p33 = scmp.ge.s32.totalorder %s32, 2
      %s34 = scalar_select %p33, 0, %s32
      %s35 = ssub.s32 %s23, %s30
      %p36 = scmp.eq.s32.totalorder %s35, 0
      %s38 = sadd.s32 %s37, 1
      %s39 = scalar_select %p36, %s37, %s38
      %p42 = pneg %p36
      %p43 = scmp.eq.s32.totalorder %s15, 3
      %p44 = por %p42, %p43
      %p45 = scmp.ne.s32.totalorder %s37, %s40
      %p46 = scmp.eq.s32.totalorder %s15, 0
      %p47 = por %p45, %p46
      %p48 = scmp.ne.s32.totalorder %s37, %s40
      %p49 = scmp.eq.s32.totalorder %s20, 3
      %p50 = por %p48, %p49
      %p51 = scmp.ne.s32.totalorder %s40, %s41
      %p52 = scmp.eq.s32.totalorder %s20, 0
      %p53 = por %p51, %p52
      %p54 = scmp.ne.s32.totalorder %s40, %s41
      %p55 = scmp.eq.s32.totalorder %s21, 3
      %p56 = por %p54, %p55
      %p58 = scmp.ne.s32.totalorder %s41, %s57
      %p59 = scmp.eq.s32.totalorder %s21, 0
      %p60 = por %p58, %p59
      %s62 = sadd.s32 %s61, 1
      %p65 = scmp.eq.s32.totalorder %s15, 3
      %p66 = scmp.ne.s32.totalorder %s61, %s63
      %p67 = scmp.eq.s32.totalorder %s15, 0
      %p68 = por %p66, %p67
      %p69 = scmp.ne.s32.totalorder %s61, %s63
      %p70 = scmp.eq.s32.totalorder %s20, 3
      %p71 = por %p69, %p70
      %p72 = scmp.ne.s32.totalorder %s63, %s64
      %p73 = scmp.eq.s32.totalorder %s20, 0
      %p74 = por %p72, %p73
      %p75 = scmp.ne.s32.totalorder %s63, %s64
      %p76 = scmp.eq.s32.totalorder %s21, 3
      %p77 = por %p75, %p76
      %p79 = scmp.ne.s32.totalorder %s64, %s78
      %p80 = scmp.eq.s32.totalorder %s21, 0
      %p81 = por %p79, %p80
      %s83 = sadd.s32 %s82, 1
      %p86 = scmp.eq.s32.totalorder %s15, 3
      %p87 = scmp.ne.s32.totalorder %s82, %s84
      %p88 = scmp.eq.s32.totalorder %s15, 0
      %p89 = por %p87, %p88
      %p90 = scmp.ne.s32.totalorder %s82, %s84
      %p91 = scmp.eq.s32.totalorder %s20, 3
      %p92 = por %p90, %p91
      %p93 = scmp.ne.s32.totalorder %s84, %s85
      %p94 = scmp.eq.s32.totalorder %s20, 0
      %p95 = por %p93, %p94
      %p96 = scmp.ne.s32.totalorder %s84, %s85
      %p97 = scmp.eq.s32.totalorder %s21, 3
      %p98 = por %p96, %p97
      %p100 = scmp.ne.s32.totalorder %s85, %s99
      %p101 = scmp.eq.s32.totalorder %s21, 0
      %p102 = por %p100, %p101
      %s104 = sadd.s32 %s103, 1
      %p107 = scmp.eq.s32.totalorder %s15, 3
      %p108 = scmp.ne.s32.totalorder %s103, %s105
      %p109 = scmp.eq.s32.totalorder %s15, 0
      %p110 = por %p108, %p109
      %p111 = scmp.ne.s32.totalorder %s103, %s105
      %p112 = scmp.eq.s32.totalorder %s20, 3
      %p113 = por %p111, %p112
      %p114 = scmp.ne.s32.totalorder %s105, %s106
      %p115 = scmp.eq.s32.totalorder %s20, 0
      %p116 = por %p114, %p115
      %p117 = scmp.ne.s32.totalorder %s105, %s106
      %p118 = scmp.eq.s32.totalorder %s21, 3
      %p119 = por %p117, %p118
      %p121 = scmp.ne.s32.totalorder %s106, %s120
      %p122 = scmp.eq.s32.totalorder %s21, 0
      %p123 = por %p121, %p122
      %s125 = sadd.s32 %s124, 1
      %p128 = scmp.eq.s32.totalorder %s15, 3
      %p129 = scmp.ne.s32.totalorder %s124, %s126
      %p130 = scmp.eq.s32.totalorder %s15, 0
      %p131 = por %p129, %p130
      %p132 = scmp.ne.s32.totalorder %s124, %s126
      %p133 = scmp.eq.s32.totalorder %s20, 3
      %p134 = por %p132, %p133
      %p135 = scmp.ne.s32.totalorder %s126, %s127
      %p136 = scmp.eq.s32.totalorder %s20, 0
      %p137 = por %p135, %p136
      %p138 = scmp.ne.s32.totalorder %s126, %s127
      %p139 = scmp.eq.s32.totalorder %s21, 3
      %p140 = por %p138, %p139
      %p142 = scmp.ne.s32.totalorder %s127, %s141
      %p143 = scmp.eq.s32.totalorder %s21, 0
      %p144 = por %p142, %p143
      %s146 = sadd.s32 %s145, 1
      %p149 = scmp.eq.s32.totalorder %s15, 3
      %p150 = scmp.ne.s32.totalorder %s145, %s147
      %p151 = scmp.eq.s32.totalorder %s15, 0
      %p152 = por %p150, %p151
      %p153 = scmp.ne.s32.totalorder %s145, %s147
      %p154 = scmp.eq.s32.totalorder %s20, 3
      %p155 = por %p153, %p154
      %p156 = scmp.ne.s32.totalorder %s147, %s148
      %p157 = scmp.eq.s32.totalorder %s20, 0
      %p158 = por %p156, %p157
      %p159 = scmp.ne.s32.totalorder %s147, %s148
      %p160 = scmp.eq.s32.totalorder %s21, 3
      %p161 = por %p159, %p160
      %p163 = scmp.ne.s32.totalorder %s148, %s162
      %p164 = scmp.eq.s32.totalorder %s21, 0
      %p165 = por %p163, %p164
      %s166 = smul.u32 %s22, %s23
      %s167 = smul.u32 %s34, %s30
      %s168 = ssub.s32 %s166, %s167
      %p169 = scmp.eq.s32.totalorder %s168, 0
      %s171 = sadd.s32 %s170, 1
      %s172 = scalar_select %p169, %s170, %s171
      %p175 = pneg %p169
      %p176 = scmp.eq.s32.totalorder %s15, 3
      %p177 = por %p175, %p176
      %p178 = scmp.ne.s32.totalorder %s170, %s173
      %p179 = scmp.eq.s32.totalorder %s15, 0
      %p180 = por %p178, %p179
      %p181 = scmp.ne.s32.totalorder %s170, %s173
      %p182 = scmp.eq.s32.totalorder %s20, 3
      %p183 = por %p181, %p182
      %p184 = scmp.ne.s32.totalorder %s173, %s174
      %p185 = scmp.eq.s32.totalorder %s20, 0
      %p186 = por %p184, %p185
      %p187 = scmp.ne.s32.totalorder %s173, %s174
      %p188 = scmp.eq.s32.totalorder %s21, 3
      %p189 = por %p187, %p188
      %p191 = scmp.ne.s32.totalorder %s174, %s190
      %p192 = scmp.eq.s32.totalorder %s21, 0
      %p193 = por %p191, %p192
      %p194 = scmp.le.s32.totalorder 1, %s15
      %p195 = scmp.lt.s32.totalorder %s15, 5
      %p196 = pnand %p194, %p195
      %p197 = pneg %p196
      // Predicated region
      $region9: #{tpu_custom_call.1} parent=5 // pred_check
        _
      $region10: #{tpu_custom_call.1} parent=5 // pred_check_branch
        %199 = sbr.rel (%p196) target = $region12
      $region11: #{tpu_custom_call.1} parent=5 // pred_region
        %s200 = ssub.s32 %s15, 1
        // Predicated region
        $region13: #{tpu_custom_call.1} parent=11 // pred_check
          %p201 = pneg %p74
        $region14: #{tpu_custom_call.1} parent=11 // pred_check_branch
          %203 = sbr.rel (%p201) target = $region16
        $region15: #{tpu_custom_call.1} parent=11 // pred_region
          _
        $region16: #{tpu_custom_call.1} parent=11 // pred_fallthru
          _
        // Predicated region
        $region17: #{tpu_custom_call.1} parent=11 // pred_check
          %p204 = pneg %p95
        $region18: #{tpu_custom_call.1} parent=11 // pred_check_branch
          %206 = sbr.rel (%p204) target = $region20
        $region19: #{tpu_custom_call.1} parent=11 // pred_region
          _
        $region20: #{tpu_custom_call.1} parent=11 // pred_fallthru
          _
        // Predicated region
        $region21: #{tpu_custom_call.1} parent=11 // pred_check
          %p207 = pneg %p116
        $region22: #{tpu_custom_call.1} parent=11 // pred_check_branch
          %209 = sbr.rel (%p207) target = $region24
        $region23: #{tpu_custom_call.1} parent=11 // pred_region
          _
        $region24: #{tpu_custom_call.1} parent=11 // pred_fallthru
          _
        // Predicated region
        $region25: #{tpu_custom_call.1} parent=11 // pred_check
          %p210 = pneg %p137
        $region26: #{tpu_custom_call.1} parent=11 // pred_check_branch
          %212 = sbr.rel (%p210) target = $region28
        $region27: #{tpu_custom_call.1} parent=11 // pred_region
          _
        $region28: #{tpu_custom_call.1} parent=11 // pred_fallthru
          _
        // Predicated region
        $region29: #{tpu_custom_call.1} parent=11 // pred_check
          %p213 = pneg %p158
        $region30: #{tpu_custom_call.1} parent=11 // pred_check_branch
          %215 = sbr.rel (%p213) target = $region32
        $region31: #{tpu_custom_call.1} parent=11 // pred_region
          _
        $region32: #{tpu_custom_call.1} parent=11 // pred_fallthru
          _
      $region12: #{tpu_custom_call.1} parent=5 // pred_fallthru
        _
      %p216 = scmp.lt.s32.totalorder %s15, 4
      // Predicated region
      $region33: #{tpu_custom_call.1} parent=5 // pred_check
        %p217 = pneg %p216
      $region34: #{tpu_custom_call.1} parent=5 // pred_check_branch
        %219 = sbr.rel (%p217) target = $region36
      $region35: #{tpu_custom_call.1} parent=5 // pred_region
        // Predicated region
        $region37: #{tpu_custom_call.1} parent=35 // pred_check
          %p220 = pneg %p47
        $region38: #{tpu_custom_call.1} parent=35 // pred_check_branch
          %222 = sbr.rel (%p220) target = $region40
        $region39: #{tpu_custom_call.1} parent=35 // pred_region
          %p223 = scmp.lt.s32.totalorder %s23, 1
          %s224 = scalar_select %p223, %s23, 1
          %s225 = smul.addr %s224, 4
          %s226 = smul.addr %s225, 2
          %s227 = scalar_lea.vmem %s0, %s226
        $region40: #{tpu_custom_call.1} parent=35 // pred_fallthru
          _
      $region36: #{tpu_custom_call.1} parent=5 // pred_fallthru
        _
      %p228 = scmp.le.s32.totalorder 1, %s15
      %p229 = scmp.lt.s32.totalorder %s15, 5
      %p230 = pnand %p228, %p229
      %p231 = pneg %p230
      // Predicated region
      $region41: #{tpu_custom_call.1} parent=5 // pred_check
        _
      $region42: #{tpu_custom_call.1} parent=5 // pred_check_branch
        %233 = sbr.rel (%p230) target = $region44
      $region43: #{tpu_custom_call.1} parent=5 // pred_region
        %s234 = ssub.s32 %s15, 1
        %p235 = scmp.lt.s32.totalorder %s25, 1
        %s236 = scalar_select %p235, %s25, 1
        %s237 = smul.addr %s236, 4
        %s238 = smul.addr %s237, 2
        %s239 = scalar_lea.vmem %s0, %s238
        %p240 = pneg %p53
        %p241 = pneg %p50
        %p242 = pneg %p74
        %p243 = pneg %p71
        %p244 = pneg %p95
        %p245 = pneg %p92
        %p246 = pneg %p116
        %p247 = pneg %p113
        %p248 = pneg %p137
        %p249 = pneg %p134
        %p250 = pneg %p158
        %p251 = pneg %p155
        %p252 = pneg %p186
        %p253 = pneg %p183
        %s254 = sand.u32 %s173, 1
        %s255 = scalar_lea.sflag [#allocation7], %s254
        %s256 = sand.u32 %s173, 1
        %s257 = smul.addr %s256, 24
        %s258 = scalar_lea.vmem [#allocation6], %s257
        %p259 = scmp.lt.s32.totalorder %s25, 1
        %s260 = scalar_select %p259, %s25, 1
        %s261 = smul.addr %s260, 4
        %s262 = smul.addr %s261, 2
        %s263 = scalar_lea.vmem %s0, %s262
        %s264 = smul.u32 %s24, %s25
        %p266 = scmp.eq.s32.totalorder %s24, 0
        %p267 = scmp.eq.s32.totalorder %s25, 0
        %p268 = pnand %p266, %p267
        %p269 = pneg %p268
        // Predicated region
        $region45: #{tpu_custom_call.1} parent=43 // pred_check
          _
        $region46: #{tpu_custom_call.1} parent=43 // pred_check_branch
          %271 = sbr.rel (%p268) target = $region48
        $region47: #{tpu_custom_call.1} parent=43 // pred_region
          %vm272 = vcmask 7168
          %273 = vst.msk [vmem:[#allocation2] sm:$0xff] %vm272, 0.0
          %274 = vst.msk [vmem:[#allocation3] sm:$0xff] %vm272, 0.0
        $region48: #{tpu_custom_call.1} parent=43 // pred_fallthru
          _
        // Predicated region
        $region49: #{tpu_custom_call.1} parent=43 // pred_check
          %p275 = pneg %p266
        $region50: #{tpu_custom_call.1} parent=43 // pred_check_branch
          %277 = sbr.rel (%p275) target = $region52
        $region51: #{tpu_custom_call.1} parent=43 // pred_region
          %v278 = vld [vmem:[%s263] sm:$0x3f]
          %v279 = vld [vmem:[%s1] sm:$0xf]
          %v280 = vld [vmem:[%s263] sm:$0xff]
          %s281 = scalar_lea.vmem %s1, 4
          %v282 = vld [vmem:[%s281] sm:$0xf]
          %v284 = vcombine.high %v280, %v280
          %v286 = vunpack.c.l.s4 1983009808
          %v287 = vunpack.c.0.s8 %v286
          %v288 = vlaneseq
          %v289 = vshrl.u32 %v288, 7
          %v290 = vsub.s32 %v287, %v289
          %v291 = vrot.slane %v280, %v290
          %v293 = vunpack.c.l.s4 1983009808
          %v294 = vunpack.c.0.s8 %v293
          %v295 = vlaneseq
          %v296 = vshrl.u32 %v295, 7
          %v297 = vsub.s32 %v294, %v296
          %v298 = vrot.slane %v284, %v297
          %v299 = vcombine.high %v291, %v291
          %v300 = vcombine.high %v298, %v298
          %301 = vrot.lane.b32.xlu0 %v291, 126
          %v302 = vpop.permute.xlu0 %301
          %303 = vrot.lane.b32.xlu0 %v299, 126
          %v304 = vpop.permute.xlu0 %303
          %305 = vrot.lane.b32.xlu0 %v298, 126
          %v306 = vpop.permute.xlu0 %305
          %307 = vrot.lane.b32.xlu0 %v300, 126
          %v308 = vpop.permute.xlu0 %307
          %vm309 = vcmask 1031168
          %v310 = vsel %vm309, %v302, %v304
          %v311 = vsel %vm309, %v304, %v306
          %v312 = vsel %vm309, %v306, %v308
          %vm313 = vcmask 31744
          %v315 = vsel %vm313, %v282, 0
          %vm317 = vcmask 1041408
          %v319 = vsel %vm317, %v310, 0
          %v322 = vsel %vm317, %v311, 0
          %v325 = vsel %vm317, %v312, 0
          %327 = vmatprep.subr.bf16.mxu0 0
          %328 = vmatpush1.bf16.msra.mxu0 0
          %329 = vmatprep.subr.bf16.mxu0 0
          %330 = vmatpush1.bf16.msra.mxu0 0
          %331 = vmatprep.subr.bf16.mxu0 0
          %332 = vmatpush1.bf16.msra.mxu0 0
          %333 = vmatprep.subr.bf16.mxu0 0
          %334 = vmatpush1.bf16.msra.mxu0 0
          %335 = vmatprep.subr.bf16.mxu0 0
          %336 = vmatpush1.bf16.msra.mxu0 0
          %337 = vmatprep.subr.bf16.mxu0 0
          %338 = vmatpush1.bf16.msra.mxu0 0
          %339 = vmatprep.subr.bf16.mxu0 0
          %340 = vmatpush1.bf16.msra.mxu0 0
          %341 = vmatprep.subr.bf16.mxu0 %v322
          %342 = vmatpush1.bf16.msra.mxu0 %v319
          %343 = vmatprep.subr.bf16.mxu0 0
          %344 = vmatpush2.bf16.msra.mxu0 0
          %345 = vmatprep.subr.bf16.mxu0 0
          %346 = vmatpush2.bf16.msra.mxu0 0
          %347 = vmatprep.subr.bf16.mxu0 0
          %348 = vmatpush2.bf16.msra.mxu0 0
          %349 = vmatprep.subr.bf16.mxu0 0
          %350 = vmatpush2.bf16.msra.mxu0 0
          %351 = vmatprep.subr.bf16.mxu0 0
          %352 = vmatpush2.bf16.msra.mxu0 0
          %353 = vmatprep.subr.bf16.mxu0 0
          %354 = vmatpush2.bf16.msra.mxu0 0
          %355 = vmatprep.subr.bf16.mxu0 0
          %356 = vmatpush2.bf16.msra.mxu0 0
          %357 = vmatprep.subr.bf16.mxu0 0
          %358 = vmatpush2.bf16.msra.mxu0 0
          %359 = vmatprep.mubr.bf16.mxu0 0
          %360 = vmatmul.mubr.bf16.gmra.mxu0 %v315
          %v361 = vpop.f32.mrf.mxu0
          %v362 = vadd.f32 0.0, %v361
          %v363 = vpop.f32.mrf.mxu0
          %v364 = vadd.f32 0.0, %v363
          %v365 = vpop.f32.mrf.mxu0
          %v366 = vpop.f32.mrf.mxu0
          %367 = vdwg.mxu0
          %368 = vmatprep.subr.bf16.mxu0 0
          %369 = vmatpush1.bf16.msra.mxu0 0
          %370 = vmatprep.subr.bf16.mxu0 0
          %371 = vmatpush1.bf16.msra.mxu0 0
          %372 = vmatprep.subr.bf16.mxu0 0
          %373 = vmatpush1.bf16.msra.mxu0 0
          %374 = vmatprep.subr.bf16.mxu0 0
          %375 = vmatpush1.bf16.msra.mxu0 0
          %376 = vmatprep.subr.bf16.mxu0 0
          %377 = vmatpush1.bf16.msra.mxu0 0
          %378 = vmatprep.subr.bf16.mxu0 0
          %379 = vmatpush1.bf16.msra.mxu0 0
          %380 = vmatprep.subr.bf16.mxu0 0
          %381 = vmatpush1.bf16.msra.mxu0 0
          %382 = vmatprep.subr.bf16.mxu0 0
          %383 = vmatpush1.bf16.msra.mxu0 %v325
          %384 = vmatprep.subr.bf16.mxu0 0
          %385 = vmatpush2.bf16.msra.mxu0 0
          %386 = vmatprep.subr.bf16.mxu0 0
          %387 = vmatpush2.bf16.msra.mxu0 0
          %388 = vmatprep.subr.bf16.mxu0 0
          %389 = vmatpush2.bf16.msra.mxu0 0
          %390 = vmatprep.subr.bf16.mxu0 0
          %391 = vmatpush2.bf16.msra.mxu0 0
          %392 = vmatprep.subr.bf16.mxu0 0
          %393 = vmatpush2.bf16.msra.mxu0 0
          %394 = vmatprep.subr.bf16.mxu0 0
          %395 = vmatpush2.bf16.msra.mxu0 0
          %396 = vmatprep.subr.bf16.mxu0 0
          %397 = vmatpush2.bf16.msra.mxu0 0
          %398 = vmatprep.subr.bf16.mxu0 0
          %399 = vmatpush2.bf16.msra.mxu0 0
          %400 = vmatprep.mubr.bf16.mxu0 0
          %401 = vmatmul.mubr.bf16.gmra.mxu0 %v315
          %v402 = vpop.f32.mrf.mxu0
          %v403 = vadd.f32 0.0, %v402
          %v404 = vpop.f32.mrf.mxu0
          %v405 = vpop.f32.mrf.mxu0
          %v406 = vpop.f32.mrf.mxu0
          %407 = vdwg.mxu0
          %v409 = vcombine.high %v278, %v278
          %v411 = vunpack.c.l.s4 1983009808
          %v412 = vunpack.c.0.s8 %v411
          %v413 = vlaneseq
          %v414 = vshrl.u32 %v413, 7
          %v415 = vsub.s32 %v412, %v414
          %v416 = vrot.slane %v278, %v415
          %v418 = vunpack.c.l.s4 1983009808
          %v419 = vunpack.c.0.s8 %v418
          %v420 = vlaneseq
          %v421 = vshrl.u32 %v420, 7
          %v422 = vsub.s32 %v419, %v421
          %v423 = vrot.slane %v409, %v422
          %v424 = vcombine.high %v416, %v416
          %v426 = vsel %vm313, %v279, 0
          %v429 = vsel %vm317, %v416, 0
          %v432 = vsel %vm317, %v424, 0
          %v435 = vsel %vm317, %v423, 0
          %437 = vmatprep.subr.bf16.mxu0 0
          %438 = vmatpush1.bf16.msra.mxu0 0
          %439 = vmatprep.subr.bf16.mxu0 0
          %440 = vmatpush1.bf16.msra.mxu0 0
          %441 = vmatprep.subr.bf16.mxu0 0
          %442 = vmatpush1.bf16.msra.mxu0 0
          %443 = vmatprep.subr.bf16.mxu0 0
          %444 = vmatpush1.bf16.msra.mxu0 0
          %445 = vmatprep.subr.bf16.mxu0 0
          %446 = vmatpush1.bf16.msra.mxu0 0
          %447 = vmatprep.subr.bf16.mxu0 0
          %448 = vmatpush1.bf16.msra.mxu0 0
          %449 = vmatprep.subr.bf16.mxu0 0
          %450 = vmatpush1.bf16.msra.mxu0 0
          %451 = vmatprep.subr.bf16.mxu0 %v432
          %452 = vmatpush1.bf16.msra.mxu0 %v429
          %453 = vmatprep.subr.bf16.mxu0 0
          %454 = vmatpush2.bf16.msra.mxu0 0
          %455 = vmatprep.subr.bf16.mxu0 0
          %456 = vmatpush2.bf16.msra.mxu0 0
          %457 = vmatprep.subr.bf16.mxu0 0
          %458 = vmatpush2.bf16.msra.mxu0 0
          %459 = vmatprep.subr.bf16.mxu0 0
          %460 = vmatpush2.bf16.msra.mxu0 0
          %461 = vmatprep.subr.bf16.mxu0 0
          %462 = vmatpush2.bf16.msra.mxu0 0
          %463 = vmatprep.subr.bf16.mxu0 0
          %464 = vmatpush2.bf16.msra.mxu0 0
          %465 = vmatprep.subr.bf16.mxu0 0
          %466 = vmatpush2.bf16.msra.mxu0 0
          %467 = vmatprep.subr.bf16.mxu0 0
          %468 = vmatpush2.bf16.msra.mxu0 0
          %469 = vmatprep.mubr.bf16.mxu0 0
          %470 = vmatmul.mubr.bf16.gmra.mxu0 %v426
          %v471 = vpop.f32.mrf.mxu0
          %v472 = vadd.f32 %v362, %v471
          %v473 = vpop.f32.mrf.mxu0
          %v474 = vadd.f32 %v364, %v473
          %v475 = vpop.f32.mrf.mxu0
          %v476 = vpop.f32.mrf.mxu0
          %477 = vdwg.mxu0
          %478 = vmatprep.subr.bf16.mxu0 0
          %479 = vmatpush1.bf16.msra.mxu0 0
          %480 = vmatprep.subr.bf16.mxu0 0
          %481 = vmatpush1.bf16.msra.mxu0 0
          %482 = vmatprep.subr.bf16.mxu0 0
          %483 = vmatpush1.bf16.msra.mxu0 0
          %484 = vmatprep.subr.bf16.mxu0 0
          %485 = vmatpush1.bf16.msra.mxu0 0
          %486 = vmatprep.subr.bf16.mxu0 0
          %487 = vmatpush1.bf16.msra.mxu0 0
          %488 = vmatprep.subr.bf16.mxu0 0
          %489 = vmatpush1.bf16.msra.mxu0 0
          %490 = vmatprep.subr.bf16.mxu0 0
          %491 = vmatpush1.bf16.msra.mxu0 0
          %492 = vmatprep.subr.bf16.mxu0 0
          %493 = vmatpush1.bf16.msra.mxu0 %v435
          %494 = vmatprep.subr.bf16.mxu0 0
          %495 = vmatpush2.bf16.msra.mxu0 0
          %496 = vmatprep.subr.bf16.mxu0 0
          %497 = vmatpush2.bf16.msra.mxu0 0
          %498 = vmatprep.subr.bf16.mxu0 0
          %499 = vmatpush2.bf16.msra.mxu0 0
          %500 = vmatprep.subr.bf16.mxu0 0
          %501 = vmatpush2.bf16.msra.mxu0 0
          %502 = vmatprep.subr.bf16.mxu0 0
          %503 = vmatpush2.bf16.msra.mxu0 0
          %504 = vmatprep.subr.bf16.mxu0 0
          %505 = vmatpush2.bf16.msra.mxu0 0
          %506 = vmatprep.subr.bf16.mxu0 0
          %507 = vmatpush2.bf16.msra.mxu0 0
          %508 = vmatprep.subr.bf16.mxu0 0
          %509 = vmatpush2.bf16.msra.mxu0 0
          %510 = vmatprep.mubr.bf16.mxu0 0
          %511 = vmatmul.mubr.bf16.gmra.mxu0 %v426
          %v512 = vpop.f32.mrf.mxu0
          %v513 = vadd.f32 %v403, %v512
          %v514 = vpop.f32.mrf.mxu0
          %v515 = vpop.f32.mrf.mxu0
          %v516 = vpop.f32.mrf.mxu0
          %517 = vdwg.mxu0
          %v518 = vld [vmem:[%s263] sm:$0xff]
          %s519 = scalar_lea.vmem %s1, 8
          %v520 = vld [vmem:[%s519] sm:$0xf]
          %v522 = vcombine.high %v518, %v518
          %v524 = vunpack.c.l.s4 1983009808
          %v525 = vunpack.c.0.s8 %v524
          %v526 = vlaneseq
          %v527 = vshrl.u32 %v526, 7
          %v528 = vsub.s32 %v525, %v527
          %v529 = vrot.slane %v518, %v528
          %v531 = vunpack.c.l.s4 1983009808
          %v532 = vunpack.c.0.s8 %v531
          %v533 = vlaneseq
          %v534 = vshrl.u32 %v533, 7
          %v535 = vsub.s32 %v532, %v534
          %v536 = vrot.slane %v522, %v535
          %v537 = vcombine.high %v529, %v529
          %v538 = vcombine.high %v536, %v536
          %539 = vrot.lane.b32.xlu0 %v529, 124
          %v540 = vpop.permute.xlu0 %539
          %541 = vrot.lane.b32.xlu0 %v537, 124
          %v542 = vpop.permute.xlu0 %541
          %543 = vrot.lane.b32.xlu0 %v536, 124
          %v544 = vpop.permute.xlu0 %543
          %545 = vrot.lane.b32.xlu0 %v538, 124
          %v546 = vpop.permute.xlu0 %545
          %vm547 = vcmask 1014784
          %v548 = vsel %vm547, %v540, %v542
          %v549 = vsel %vm547, %v542, %v544
          %v550 = vsel %vm547, %v544, %v546
          %v552 = vsel %vm313, %v520, 0
          %v555 = vsel %vm317, %v548, 0
          %v558 = vsel %vm317, %v549, 0
          %v561 = vsel %vm317, %v550, 0
          %563 = vmatprep.subr.bf16.mxu0 0
          %564 = vmatpush1.bf16.msra.mxu0 0
          %565 = vmatprep.subr.bf16.mxu0 0
          %566 = vmatpush1.bf16.msra.mxu0 0
          %567 = vmatprep.subr.bf16.mxu0 0
          %568 = vmatpush1.bf16.msra.mxu0 0
          %569 = vmatprep.subr.bf16.mxu0 0
          %570 = vmatpush1.bf16.msra.mxu0 0
          %571 = vmatprep.subr.bf16.mxu0 0
          %572 = vmatpush1.bf16.msra.mxu0 0
          %573 = vmatprep.subr.bf16.mxu0 0
          %574 = vmatpush1.bf16.msra.mxu0 0
          %575 = vmatprep.subr.bf16.mxu0 0
          %576 = vmatpush1.bf16.msra.mxu0 0
          %577 = vmatprep.subr.bf16.mxu0 %v558
          %578 = vmatpush1.bf16.msra.mxu0 %v555
          %579 = vmatprep.subr.bf16.mxu0 0
          %580 = vmatpush2.bf16.msra.mxu0 0
          %581 = vmatprep.subr.bf16.mxu0 0
          %582 = vmatpush2.bf16.msra.mxu0 0
          %583 = vmatprep.subr.bf16.mxu0 0
          %584 = vmatpush2.bf16.msra.mxu0 0
          %585 = vmatprep.subr.bf16.mxu0 0
          %586 = vmatpush2.bf16.msra.mxu0 0
          %587 = vmatprep.subr.bf16.mxu0 0
          %588 = vmatpush2.bf16.msra.mxu0 0
          %589 = vmatprep.subr.bf16.mxu0 0
          %590 = vmatpush2.bf16.msra.mxu0 0
          %591 = vmatprep.subr.bf16.mxu0 0
          %592 = vmatpush2.bf16.msra.mxu0 0
          %593 = vmatprep.subr.bf16.mxu0 0
          %594 = vmatpush2.bf16.msra.mxu0 0
          %595 = vmatprep.mubr.bf16.mxu0 0
          %596 = vmatmul.mubr.bf16.gmra.mxu0 %v552
          %v597 = vpop.f32.mrf.mxu0
          %v598 = vadd.f32 0.0, %v597
          %v599 = vpop.f32.mrf.mxu0
          %v600 = vadd.f32 0.0, %v599
          %v601 = vpop.f32.mrf.mxu0
          %v602 = vpop.f32.mrf.mxu0
          %603 = vdwg.mxu0
          %604 = vmatprep.subr.bf16.mxu0 0
          %605 = vmatpush1.bf16.msra.mxu0 0
          %606 = vmatprep.subr.bf16.mxu0 0
          %607 = vmatpush1.bf16.msra.mxu0 0
          %608 = vmatprep.subr.bf16.mxu0 0
          %609 = vmatpush1.bf16.msra.mxu0 0
          %610 = vmatprep.subr.bf16.mxu0 0
          %611 = vmatpush1.bf16.msra.mxu0 0
          %612 = vmatprep.subr.bf16.mxu0 0
          %613 = vmatpush1.bf16.msra.mxu0 0
          %614 = vmatprep.subr.bf16.mxu0 0
          %615 = vmatpush1.bf16.msra.mxu0 0
          %616 = vmatprep.subr.bf16.mxu0 0
          %617 = vmatpush1.bf16.msra.mxu0 0
          %618 = vmatprep.subr.bf16.mxu0 0
          %619 = vmatpush1.bf16.msra.mxu0 %v561
          %620 = vmatprep.subr.bf16.mxu0 0
          %621 = vmatpush2.bf16.msra.mxu0 0
          %622 = vmatprep.subr.bf16.mxu0 0
          %623 = vmatpush2.bf16.msra.mxu0 0
          %624 = vmatprep.subr.bf16.mxu0 0
          %625 = vmatpush2.bf16.msra.mxu0 0
          %626 = vmatprep.subr.bf16.mxu0 0
          %627 = vmatpush2.bf16.msra.mxu0 0
          %628 = vmatprep.subr.bf16.mxu0 0
          %629 = vmatpush2.bf16.msra.mxu0 0
          %630 = vmatprep.subr.bf16.mxu0 0
          %631 = vmatpush2.bf16.msra.mxu0 0
          %632 = vmatprep.subr.bf16.mxu0 0
          %633 = vmatpush2.bf16.msra.mxu0 0
          %634 = vmatprep.subr.bf16.mxu0 0
          %635 = vmatpush2.bf16.msra.mxu0 0
          %636 = vmatprep.mubr.bf16.mxu0 0
          %637 = vmatmul.mubr.bf16.gmra.mxu0 %v552
          %v638 = vpop.f32.mrf.mxu0
          %v639 = vadd.f32 0.0, %v638
          %v640 = vpop.f32.mrf.mxu0
          %v641 = vpop.f32.mrf.mxu0
          %v642 = vpop.f32.mrf.mxu0
          %643 = vdwg.mxu0
          %v644 = vadd.f32 %v472, %v598
          %v645 = vadd.f32 %v474, %v600
          %v646 = vadd.f32 %v513, %v639
          %v647 = vld [vmem:[%s263] sm:$0xff]
          %s648 = scalar_lea.vmem %s1, 12
          %v649 = vld [vmem:[%s648] sm:$0xf]
          %v651 = vcombine.high %v647, %v647
          %v653 = vunpack.c.l.s4 1983009808
          %v654 = vunpack.c.0.s8 %v653
          %v655 = vlaneseq
          %v656 = vshrl.u32 %v655, 7
          %v657 = vsub.s32 %v654, %v656
          %v658 = vrot.slane %v647, %v657
          %v660 = vunpack.c.l.s4 1983009808
          %v661 = vunpack.c.0.s8 %v660
          %v662 = vlaneseq
          %v663 = vshrl.u32 %v662, 7
          %v664 = vsub.s32 %v661, %v663
          %v665 = vrot.slane %v651, %v664
          %v666 = vcombine.high %v658, %v658
          %v667 = vcombine.high %v665, %v665
          %668 = vrot.lane.b32.xlu0 %v658, 88
          %v669 = vpop.permute.xlu0 %668
          %670 = vrot.lane.b32.xlu0 %v666, 88
          %v671 = vpop.permute.xlu0 %670
          %672 = vrot.lane.b32.xlu0 %v665, 88
          %v673 = vpop.permute.xlu0 %672
          %674 = vrot.lane.b32.xlu0 %v667, 88
          %v675 = vpop.permute.xlu0 %674
          %vm676 = vcmask 719872
          %v677 = vsel %vm676, %v669, %v671
          %v678 = vsel %vm676, %v671, %v673
          %v679 = vsel %vm676, %v673, %v675
          %v681 = vsel %vm313, %v649, 0
          %v684 = vsel %vm317, %v677, 0
          %v687 = vsel %vm317, %v678, 0
          %v690 = vsel %vm317, %v679, 0
          %692 = vmatprep.subr.bf16.mxu0 0
          %693 = vmatpush1.bf16.msra.mxu0 0
          %694 = vmatprep.subr.bf16.mxu0 0
          %695 = vmatpush1.bf16.msra.mxu0 0
          %696 = vmatprep.subr.bf16.mxu0 0
          %697 = vmatpush1.bf16.msra.mxu0 0
          %698 = vmatprep.subr.bf16.mxu0 0
          %699 = vmatpush1.bf16.msra.mxu0 0
          %700 = vmatprep.subr.bf16.mxu0 0
          %701 = vmatpush1.bf16.msra.mxu0 0
          %702 = vmatprep.subr.bf16.mxu0 0
          %703 = vmatpush1.bf16.msra.mxu0 0
          %704 = vmatprep.subr.bf16.mxu0 0
          %705 = vmatpush1.bf16.msra.mxu0 0
          %706 = vmatprep.subr.bf16.mxu0 %v687
          %707 = vmatpush1.bf16.msra.mxu0 %v684
          %708 = vmatprep.subr.bf16.mxu0 0
          %709 = vmatpush2.bf16.msra.mxu0 0
          %710 = vmatprep.subr.bf16.mxu0 0
          %711 = vmatpush2.bf16.msra.mxu0 0
          %712 = vmatprep.subr.bf16.mxu0 0
          %713 = vmatpush2.bf16.msra.mxu0 0
          %714 = vmatprep.subr.bf16.mxu0 0
          %715 = vmatpush2.bf16.msra.mxu0 0
          %716 = vmatprep.subr.bf16.mxu0 0
          %717 = vmatpush2.bf16.msra.mxu0 0
          %718 = vmatprep.subr.bf16.mxu0 0
          %719 = vmatpush2.bf16.msra.mxu0 0
          %720 = vmatprep.subr.bf16.mxu0 0
          %721 = vmatpush2.bf16.msra.mxu0 0
          %722 = vmatprep.subr.bf16.mxu0 0
          %723 = vmatpush2.bf16.msra.mxu0 0
          %724 = vmatprep.mubr.bf16.mxu0 0
          %725 = vmatmul.mubr.bf16.gmra.mxu0 %v681
          %v726 = vpop.f32.mrf.mxu0
          %v727 = vadd.f32 0.0, %v726
          %v728 = vpop.f32.mrf.mxu0
          %v729 = vadd.f32 0.0, %v728
          %v730 = vpop.f32.mrf.mxu0
          %v731 = vpop.f32.mrf.mxu0
          %732 = vdwg.mxu0
          %733 = vmatprep.subr.bf16.mxu0 0
          %734 = vmatpush1.bf16.msra.mxu0 0
          %735 = vmatprep.subr.bf16.mxu0 0
          %736 = vmatpush1.bf16.msra.mxu0 0
          %737 = vmatprep.subr.bf16.mxu0 0
          %738 = vmatpush1.bf16.msra.mxu0 0
          %739 = vmatprep.subr.bf16.mxu0 0
          %740 = vmatpush1.bf16.msra.mxu0 0
          %741 = vmatprep.subr.bf16.mxu0 0
          %742 = vmatpush1.bf16.msra.mxu0 0
          %743 = vmatprep.subr.bf16.mxu0 0
          %744 = vmatpush1.bf16.msra.mxu0 0
          %745 = vmatprep.subr.bf16.mxu0 0
          %746 = vmatpush1.bf16.msra.mxu0 0
          %747 = vmatprep.subr.bf16.mxu0 0
          %748 = vmatpush1.bf16.msra.mxu0 %v690
          %749 = vmatprep.subr.bf16.mxu0 0
          %750 = vmatpush2.bf16.msra.mxu0 0
          %751 = vmatprep.subr.bf16.mxu0 0
          %752 = vmatpush2.bf16.msra.mxu0 0
          %753 = vmatprep.subr.bf16.mxu0 0
          %754 = vmatpush2.bf16.msra.mxu0 0
          %755 = vmatprep.subr.bf16.mxu0 0
          %756 = vmatpush2.bf16.msra.mxu0 0
          %757 = vmatprep.subr.bf16.mxu0 0
          %758 = vmatpush2.bf16.msra.mxu0 0
          %759 = vmatprep.subr.bf16.mxu0 0
          %760 = vmatpush2.bf16.msra.mxu0 0
          %761 = vmatprep.subr.bf16.mxu0 0
          %762 = vmatpush2.bf16.msra.mxu0 0
          %763 = vmatprep.subr.bf16.mxu0 0
          %764 = vmatpush2.bf16.msra.mxu0 0
          %765 = vmatprep.mubr.bf16.mxu0 0
          %766 = vmatmul.mubr.bf16.gmra.mxu0 %v681
          %v767 = vpop.f32.mrf.mxu0
          %v768 = vadd.f32 0.0, %v767
          %v769 = vpop.f32.mrf.mxu0
          %v770 = vpop.f32.mrf.mxu0
          %v771 = vpop.f32.mrf.mxu0
          %772 = vdwg.mxu0
          %v773 = vadd.f32 %v644, %v727
          %v774 = vadd.f32 %v645, %v729
          %v775 = vadd.f32 %v646, %v768
          %v776 = vld [vmem:[%s263] sm:$0xff]
          %s777 = scalar_lea.vmem %s1, 16
          %v778 = vld [vmem:[%s777] sm:$0xf]
          %v780 = vcombine.high %v776, %v776
          %v782 = vunpack.c.l.s4 1983009808
          %v783 = vunpack.c.0.s8 %v782
          %v784 = vlaneseq
          %v785 = vshrl.u32 %v784, 7
          %v786 = vsub.s32 %v783, %v785
          %v787 = vrot.slane %v776, %v786
          %v789 = vunpack.c.l.s4 1983009808
          %v790 = vunpack.c.0.s8 %v789
          %v791 = vlaneseq
          %v792 = vshrl.u32 %v791, 7
          %v793 = vsub.s32 %v790, %v792
          %v794 = vrot.slane %v780, %v793
          %v795 = vcombine.high %v787, %v787
          %v796 = vcombine.high %v794, %v794
          %797 = vrot.lane.b32.xlu0 %v787, 86
          %v798 = vpop.permute.xlu0 %797
          %799 = vrot.lane.b32.xlu0 %v795, 86
          %v800 = vpop.permute.xlu0 %799
          %801 = vrot.lane.b32.xlu0 %v794, 86
          %v802 = vpop.permute.xlu0 %801
          %803 = vrot.lane.b32.xlu0 %v796, 86
          %v804 = vpop.permute.xlu0 %803
          %vm805 = vcmask 703488
          %v806 = vsel %vm805, %v798, %v800
          %v807 = vsel %vm805, %v800, %v802
          %v808 = vsel %vm805, %v802, %v804
          %v810 = vsel %vm313, %v778, 0
          %v813 = vsel %vm317, %v806, 0
          %v816 = vsel %vm317, %v807, 0
          %v819 = vsel %vm317, %v808, 0
          %821 = vmatprep.subr.bf16.mxu0 0
          %822 = vmatpush1.bf16.msra.mxu0 0
          %823 = vmatprep.subr.bf16.mxu0 0
          %824 = vmatpush1.bf16.msra.mxu0 0
          %825 = vmatprep.subr.bf16.mxu0 0
          %826 = vmatpush1.bf16.msra.mxu0 0
          %827 = vmatprep.subr.bf16.mxu0 0
          %828 = vmatpush1.bf16.msra.mxu0 0
          %829 = vmatprep.subr.bf16.mxu0 0
          %830 = vmatpush1.bf16.msra.mxu0 0
          %831 = vmatprep.subr.bf16.mxu0 0
          %832 = vmatpush1.bf16.msra.mxu0 0
          %833 = vmatprep.subr.bf16.mxu0 0
          %834 = vmatpush1.bf16.msra.mxu0 0
          %835 = vmatprep.subr.bf16.mxu0 %v816
          %836 = vmatpush1.bf16.msra.mxu0 %v813
          %837 = vmatprep.subr.bf16.mxu0 0
          %838 = vmatpush2.bf16.msra.mxu0 0
          %839 = vmatprep.subr.bf16.mxu0 0
          %840 = vmatpush2.bf16.msra.mxu0 0
          %841 = vmatprep.subr.bf16.mxu0 0
          %842 = vmatpush2.bf16.msra.mxu0 0
          %843 = vmatprep.subr.bf16.mxu0 0
          %844 = vmatpush2.bf16.msra.mxu0 0
          %845 = vmatprep.subr.bf16.mxu0 0
          %846 = vmatpush2.bf16.msra.mxu0 0
          %847 = vmatprep.subr.bf16.mxu0 0
          %848 = vmatpush2.bf16.msra.mxu0 0
          %849 = vmatprep.subr.bf16.mxu0 0
          %850 = vmatpush2.bf16.msra.mxu0 0
          %851 = vmatprep.subr.bf16.mxu0 0
          %852 = vmatpush2.bf16.msra.mxu0 0
          %853 = vmatprep.mubr.bf16.mxu0 0
          %854 = vmatmul.mubr.bf16.gmra.mxu0 %v810
          %v855 = vpop.f32.mrf.mxu0
          %v856 = vadd.f32 0.0, %v855
          %v857 = vpop.f32.mrf.mxu0
          %v858 = vadd.f32 0.0, %v857
          %v859 = vpop.f32.mrf.mxu0
          %v860 = vpop.f32.mrf.mxu0
          %861 = vdwg.mxu0
          %862 = vmatprep.subr.bf16.mxu0 0
          %863 = vmatpush1.bf16.msra.mxu0 0
          %864 = vmatprep.subr.bf16.mxu0 0
          %865 = vmatpush1.bf16.msra.mxu0 0
          %866 = vmatprep.subr.bf16.mxu0 0
          %867 = vmatpush1.bf16.msra.mxu0 0
          %868 = vmatprep.subr.bf16.mxu0 0
          %869 = vmatpush1.bf16.msra.mxu0 0
          %870 = vmatprep.subr.bf16.mxu0 0
          %871 = vmatpush1.bf16.msra.mxu0 0
          %872 = vmatprep.subr.bf16.mxu0 0
          %873 = vmatpush1.bf16.msra.mxu0 0
          %874 = vmatprep.subr.bf16.mxu0 0
          %875 = vmatpush1.bf16.msra.mxu0 0
          %876 = vmatprep.subr.bf16.mxu0 0
          %877 = vmatpush1.bf16.msra.mxu0 %v819
          %878 = vmatprep.subr.bf16.mxu0 0
          %879 = vmatpush2.bf16.msra.mxu0 0
          %880 = vmatprep.subr.bf16.mxu0 0
          %881 = vmatpush2.bf16.msra.mxu0 0
          %882 = vmatprep.subr.bf16.mxu0 0
          %883 = vmatpush2.bf16.msra.mxu0 0
          %884 = vmatprep.subr.bf16.mxu0 0
          %885 = vmatpush2.bf16.msra.mxu0 0
          %886 = vmatprep.subr.bf16.mxu0 0
          %887 = vmatpush2.bf16.msra.mxu0 0
          %888 = vmatprep.subr.bf16.mxu0 0
          %889 = vmatpush2.bf16.msra.mxu0 0
          %890 = vmatprep.subr.bf16.mxu0 0
          %891 = vmatpush2.bf16.msra.mxu0 0
          %892 = vmatprep.subr.bf16.mxu0 0
          %893 = vmatpush2.bf16.msra.mxu0 0
          %894 = vmatprep.mubr.bf16.mxu0 0
          %895 = vmatmul.mubr.bf16.gmra.mxu0 %v810
          %v896 = vpop.f32.mrf.mxu0
          %v897 = vadd.f32 0.0, %v896
          %v898 = vpop.f32.mrf.mxu0
          %v899 = vpop.f32.mrf.mxu0
          %v900 = vpop.f32.mrf.mxu0
          %901 = vdwg.mxu0
          %v902 = vadd.f32 %v773, %v856
          %v903 = vadd.f32 %v774, %v858
          %v904 = vadd.f32 %v775, %v897
          %v905 = vld [vmem:[%s263] sm:$0xff]
          %s906 = scalar_lea.vmem %s1, 20
          %v907 = vld [vmem:[%s906] sm:$0xf]
          %v909 = vcombine.high %v905, %v905
          %v911 = vunpack.c.l.s4 1983009808
          %v912 = vunpack.c.0.s8 %v911
          %v913 = vlaneseq
          %v914 = vshrl.u32 %v913, 7
          %v915 = vsub.s32 %v912, %v914
          %v916 = vrot.slane %v905, %v915
          %v918 = vunpack.c.l.s4 1983009808
          %v919 = vunpack.c.0.s8 %v918
          %v920 = vlaneseq
          %v921 = vshrl.u32 %v920, 7
          %v922 = vsub.s32 %v919, %v921
          %v923 = vrot.slane %v909, %v922
          %v924 = vcombine.high %v916, %v916
          %v925 = vcombine.high %v923, %v923
          %926 = vrot.lane.b32.xlu0 %v916, 84
          %v927 = vpop.permute.xlu0 %926
          %928 = vrot.lane.b32.xlu0 %v924, 84
          %v929 = vpop.permute.xlu0 %928
          %930 = vrot.lane.b32.xlu0 %v923, 84
          %v931 = vpop.permute.xlu0 %930
          %932 = vrot.lane.b32.xlu0 %v925, 84
          %v933 = vpop.permute.xlu0 %932
          %vm934 = vcmask 687104
          %v935 = vsel %vm934, %v927, %v929
          %v936 = vsel %vm934, %v929, %v931
          %v937 = vsel %vm934, %v931, %v933
          %v939 = vsel %vm313, %v907, 0
          %v942 = vsel %vm317, %v935, 0
          %v945 = vsel %vm317, %v936, 0
          %v948 = vsel %vm317, %v937, 0
          %950 = vmatprep.subr.bf16.mxu0 0
          %951 = vmatpush1.bf16.msra.mxu0 0
          %952 = vmatprep.subr.bf16.mxu0 0
          %953 = vmatpush1.bf16.msra.mxu0 0
          %954 = vmatprep.subr.bf16.mxu0 0
          %955 = vmatpush1.bf16.msra.mxu0 0
          %956 = vmatprep.subr.bf16.mxu0 0
          %957 = vmatpush1.bf16.msra.mxu0 0
          %958 = vmatprep.subr.bf16.mxu0 0
          %959 = vmatpush1.bf16.msra.mxu0 0
          %960 = vmatprep.subr.bf16.mxu0 0
          %961 = vmatpush1.bf16.msra.mxu0 0
          %962 = vmatprep.subr.bf16.mxu0 0
          %963 = vmatpush1.bf16.msra.mxu0 0
          %964 = vmatprep.subr.bf16.mxu0 %v945
          %965 = vmatpush1.bf16.msra.mxu0 %v942
          %966 = vmatprep.subr.bf16.mxu0 0
          %967 = vmatpush2.bf16.msra.mxu0 0
          %968 = vmatprep.subr.bf16.mxu0 0
          %969 = vmatpush2.bf16.msra.mxu0 0
          %970 = vmatprep.subr.bf16.mxu0 0
          %971 = vmatpush2.bf16.msra.mxu0 0
          %972 = vmatprep.subr.bf16.mxu0 0
          %973 = vmatpush2.bf16.msra.mxu0 0
          %974 = vmatprep.subr.bf16.mxu0 0
          %975 = vmatpush2.bf16.msra.mxu0 0
          %976 = vmatprep.subr.bf16.mxu0 0
          %977 = vmatpush2.bf16.msra.mxu0 0
          %978 = vmatprep.subr.bf16.mxu0 0
          %979 = vmatpush2.bf16.msra.mxu0 0
          %980 = vmatprep.subr.bf16.mxu0 0
          %981 = vmatpush2.bf16.msra.mxu0 0
          %982 = vmatprep.mubr.bf16.mxu0 0
          %983 = vmatmul.mubr.bf16.gmra.mxu0 %v939
          %v984 = vpop.f32.mrf.mxu0
          %v985 = vadd.f32 0.0, %v984
          %v986 = vpop.f32.mrf.mxu0
          %v987 = vadd.f32 0.0, %v986
          %v988 = vpop.f32.mrf.mxu0
          %v989 = vpop.f32.mrf.mxu0
          %990 = vdwg.mxu0
          %991 = vmatprep.subr.bf16.mxu0 0
          %992 = vmatpush1.bf16.msra.mxu0 0
          %993 = vmatprep.subr.bf16.mxu0 0
          %994 = vmatpush1.bf16.msra.mxu0 0
          %995 = vmatprep.subr.bf16.mxu0 0
          %996 = vmatpush1.bf16.msra.mxu0 0
          %997 = vmatprep.subr.bf16.mxu0 0
          %998 = vmatpush1.bf16.msra.mxu0 0
          %999 = vmatprep.subr.bf16.mxu0 0
          %1000 = vmatpush1.bf16.msra.mxu0 0
          %1001 = vmatprep.subr.bf16.mxu0 0
          %1002 = vmatpush1.bf16.msra.mxu0 0
          %1003 = vmatprep.subr.bf16.mxu0 0
          %1004 = vmatpush1.bf16.msra.mxu0 0
          %1005 = vmatprep.subr.bf16.mxu0 0
          %1006 = vmatpush1.bf16.msra.mxu0 %v948
          %1007 = vmatprep.subr.bf16.mxu0 0
          %1008 = vmatpush2.bf16.msra.mxu0 0
          %1009 = vmatprep.subr.bf16.mxu0 0
          %1010 = vmatpush2.bf16.msra.mxu0 0
          %1011 = vmatprep.subr.bf16.mxu0 0
          %1012 = vmatpush2.bf16.msra.mxu0 0
          %1013 = vmatprep.subr.bf16.mxu0 0
          %1014 = vmatpush2.bf16.msra.mxu0 0
          %1015 = vmatprep.subr.bf16.mxu0 0
          %1016 = vmatpush2.bf16.msra.mxu0 0
          %1017 = vmatprep.subr.bf16.mxu0 0
          %1018 = vmatpush2.bf16.msra.mxu0 0
          %1019 = vmatprep.subr.bf16.mxu0 0
          %1020 = vmatpush2.bf16.msra.mxu0 0
          %1021 = vmatprep.subr.bf16.mxu0 0
          %1022 = vmatpush2.bf16.msra.mxu0 0
          %1023 = vmatprep.mubr.bf16.mxu0 0
          %1024 = vmatmul.mubr.bf16.gmra.mxu0 %v939
          %v1025 = vpop.f32.mrf.mxu0
          %v1026 = vadd.f32 0.0, %v1025
          %v1027 = vpop.f32.mrf.mxu0
          %v1028 = vpop.f32.mrf.mxu0
          %v1029 = vpop.f32.mrf.mxu0
          %1030 = vdwg.mxu0
          %v1031 = vadd.f32 %v902, %v985
          %v1032 = vadd.f32 %v903, %v987
          %v1033 = vadd.f32 %v904, %v1026
          %v1034 = vld [vmem:[%s263] sm:$0xff]
          %s1035 = scalar_lea.vmem %s1, 24
          %v1036 = vld [vmem:[%s1035] sm:$0xf]
          %v1038 = vcombine.high %v1034, %v1034
          %v1040 = vunpack.c.l.s4 1983009808
          %v1041 = vunpack.c.0.s8 %v1040
          %v1042 = vlaneseq
          %v1043 = vshrl.u32 %v1042, 7
          %v1044 = vsub.s32 %v1041, %v1043
          %v1045 = vrot.slane %v1034, %v1044
          %v1047 = vunpack.c.l.s4 1983009808
          %v1048 = vunpack.c.0.s8 %v1047
          %v1049 = vlaneseq
          %v1050 = vshrl.u32 %v1049, 7
          %v1051 = vsub.s32 %v1048, %v1050
          %v1052 = vrot.slane %v1038, %v1051
          %v1053 = vcombine.high %v1045, %v1045
          %v1054 = vcombine.high %v1052, %v1052
          %1055 = vrot.lane.b32.xlu0 %v1045, 48
          %v1056 = vpop.permute.xlu0 %1055
          %1057 = vrot.lane.b32.xlu0 %v1053, 48
          %v1058 = vpop.permute.xlu0 %1057
          %1059 = vrot.lane.b32.xlu0 %v1052, 48
          %v1060 = vpop.permute.xlu0 %1059
          %1061 = vrot.lane.b32.xlu0 %v1054, 48
          %v1062 = vpop.permute.xlu0 %1061
          %vm1063 = vcmask 392192
          %v1064 = vsel %vm1063, %v1056, %v1058
          %v1065 = vsel %vm1063, %v1058, %v1060
          %v1066 = vsel %vm1063, %v1060, %v1062
          %v1068 = vsel %vm313, %v1036, 0
          %v1071 = vsel %vm317, %v1064, 0
          %v1074 = vsel %vm317, %v1065, 0
          %v1077 = vsel %vm317, %v1066, 0
          %1079 = vmatprep.subr.bf16.mxu0 0
          %1080 = vmatpush1.bf16.msra.mxu0 0
          %1081 = vmatprep.subr.bf16.mxu0 0
          %1082 = vmatpush1.bf16.msra.mxu0 0
          %1083 = vmatprep.subr.bf16.mxu0 0
          %1084 = vmatpush1.bf16.msra.mxu0 0
          %1085 = vmatprep.subr.bf16.mxu0 0
          %1086 = vmatpush1.bf16.msra.mxu0 0
          %1087 = vmatprep.subr.bf16.mxu0 0
          %1088 = vmatpush1.bf16.msra.mxu0 0
          %1089 = vmatprep.subr.bf16.mxu0 0
          %1090 = vmatpush1.bf16.msra.mxu0 0
          %1091 = vmatprep.subr.bf16.mxu0 0
          %1092 = vmatpush1.bf16.msra.mxu0 0
          %1093 = vmatprep.subr.bf16.mxu0 %v1074
          %1094 = vmatpush1.bf16.msra.mxu0 %v1071
          %1095 = vmatprep.subr.bf16.mxu0 0
          %1096 = vmatpush2.bf16.msra.mxu0 0
          %1097 = vmatprep.subr.bf16.mxu0 0
          %1098 = vmatpush2.bf16.msra.mxu0 0
          %1099 = vmatprep.subr.bf16.mxu0 0
          %1100 = vmatpush2.bf16.msra.mxu0 0
          %1101 = vmatprep.subr.bf16.mxu0 0
          %1102 = vmatpush2.bf16.msra.mxu0 0
          %1103 = vmatprep.subr.bf16.mxu0 0
          %1104 = vmatpush2.bf16.msra.mxu0 0
          %1105 = vmatprep.subr.bf16.mxu0 0
          %1106 = vmatpush2.bf16.msra.mxu0 0
          %1107 = vmatprep.subr.bf16.mxu0 0
          %1108 = vmatpush2.bf16.msra.mxu0 0
          %1109 = vmatprep.subr.bf16.mxu0 0
          %1110 = vmatpush2.bf16.msra.mxu0 0
          %1111 = vmatprep.mubr.bf16.mxu0 0
          %1112 = vmatmul.mubr.bf16.gmra.mxu0 %v1068
          %v1113 = vpop.f32.mrf.mxu0
          %v1114 = vadd.f32 0.0, %v1113
          %v1115 = vpop.f32.mrf.mxu0
          %v1116 = vadd.f32 0.0, %v1115
          %v1117 = vpop.f32.mrf.mxu0
          %v1118 = vpop.f32.mrf.mxu0
          %1119 = vdwg.mxu0
          %1120 = vmatprep.subr.bf16.mxu0 0
          %1121 = vmatpush1.bf16.msra.mxu0 0
          %1122 = vmatprep.subr.bf16.mxu0 0
          %1123 = vmatpush1.bf16.msra.mxu0 0
          %1124 = vmatprep.subr.bf16.mxu0 0
          %1125 = vmatpush1.bf16.msra.mxu0 0
          %1126 = vmatprep.subr.bf16.mxu0 0
          %1127 = vmatpush1.bf16.msra.mxu0 0
          %1128 = vmatprep.subr.bf16.mxu0 0
          %1129 = vmatpush1.bf16.msra.mxu0 0
          %1130 = vmatprep.subr.bf16.mxu0 0
          %1131 = vmatpush1.bf16.msra.mxu0 0
          %1132 = vmatprep.subr.bf16.mxu0 0
          %1133 = vmatpush1.bf16.msra.mxu0 0
          %1134 = vmatprep.subr.bf16.mxu0 0
          %1135 = vmatpush1.bf16.msra.mxu0 %v1077
          %1136 = vmatprep.subr.bf16.mxu0 0
          %1137 = vmatpush2.bf16.msra.mxu0 0
          %1138 = vmatprep.subr.bf16.mxu0 0
          %1139 = vmatpush2.bf16.msra.mxu0 0
          %1140 = vmatprep.subr.bf16.mxu0 0
          %1141 = vmatpush2.bf16.msra.mxu0 0
          %1142 = vmatprep.subr.bf16.mxu0 0
          %1143 = vmatpush2.bf16.msra.mxu0 0
          %1144 = vmatprep.subr.bf16.mxu0 0
          %1145 = vmatpush2.bf16.msra.mxu0 0
          %1146 = vmatprep.subr.bf16.mxu0 0
          %1147 = vmatpush2.bf16.msra.mxu0 0
          %1148 = vmatprep.subr.bf16.mxu0 0
          %1149 = vmatpush2.bf16.msra.mxu0 0
          %1150 = vmatprep.subr.bf16.mxu0 0
          %1151 = vmatpush2.bf16.msra.mxu0 0
          %1152 = vmatprep.mubr.bf16.mxu0 0
          %1153 = vmatmul.mubr.bf16.gmra.mxu0 %v1068
          %v1154 = vpop.f32.mrf.mxu0
          %v1155 = vadd.f32 0.0, %v1154
          %v1156 = vpop.f32.mrf.mxu0
          %v1157 = vpop.f32.mrf.mxu0
          %v1158 = vpop.f32.mrf.mxu0
          %1159 = vdwg.mxu0
          %v1160 = vadd.f32 %v1031, %v1114
          %v1161 = vadd.f32 %v1032, %v1116
          %v1162 = vadd.f32 %v1033, %v1155
          %v1163 = vld [vmem:[%s263] sm:$0xff]
          %s1164 = scalar_lea.vmem %s1, 28
          %v1165 = vld [vmem:[%s1164] sm:$0xf]
          %v1167 = vcombine.high %v1163, %v1163
          %v1169 = vunpack.c.l.s4 1983009808
          %v1170 = vunpack.c.0.s8 %v1169
          %v1171 = vlaneseq
          %v1172 = vshrl.u32 %v1171, 7
          %v1173 = vsub.s32 %v1170, %v1172
          %v1174 = vrot.slane %v1163, %v1173
          %v1176 = vunpack.c.l.s4 1983009808
          %v1177 = vunpack.c.0.s8 %v1176
          %v1178 = vlaneseq
          %v1179 = vshrl.u32 %v1178, 7
          %v1180 = vsub.s32 %v1177, %v1179
          %v1181 = vrot.slane %v1167, %v1180
          %v1182 = vcombine.high %v1174, %v1174
          %v1183 = vcombine.high %v1181, %v1181
          %1184 = vrot.lane.b32.xlu0 %v1174, 46
          %v1185 = vpop.permute.xlu0 %1184
          %1186 = vrot.lane.b32.xlu0 %v1182, 46
          %v1187 = vpop.permute.xlu0 %1186
          %1188 = vrot.lane.b32.xlu0 %v1181, 46
          %v1189 = vpop.permute.xlu0 %1188
          %1190 = vrot.lane.b32.xlu0 %v1183, 46
          %v1191 = vpop.permute.xlu0 %1190
          %vm1192 = vcmask 375808
          %v1193 = vsel %vm1192, %v1185, %v1187
          %v1194 = vsel %vm1192, %v1187, %v1189
          %v1195 = vsel %vm1192, %v1189, %v1191
          %v1197 = vsel %vm313, %v1165, 0
          %v1200 = vsel %vm317, %v1193, 0
          %v1203 = vsel %vm317, %v1194, 0
          %v1206 = vsel %vm317, %v1195, 0
          %1208 = vmatprep.subr.bf16.mxu0 0
          %1209 = vmatpush1.bf16.msra.mxu0 0
          %1210 = vmatprep.subr.bf16.mxu0 0
          %1211 = vmatpush1.bf16.msra.mxu0 0
          %1212 = vmatprep.subr.bf16.mxu0 0
          %1213 = vmatpush1.bf16.msra.mxu0 0
          %1214 = vmatprep.subr.bf16.mxu0 0
          %1215 = vmatpush1.bf16.msra.mxu0 0
          %1216 = vmatprep.subr.bf16.mxu0 0
          %1217 = vmatpush1.bf16.msra.mxu0 0
          %1218 = vmatprep.subr.bf16.mxu0 0
          %1219 = vmatpush1.bf16.msra.mxu0 0
          %1220 = vmatprep.subr.bf16.mxu0 0
          %1221 = vmatpush1.bf16.msra.mxu0 0
          %1222 = vmatprep.subr.bf16.mxu0 %v1203
          %1223 = vmatpush1.bf16.msra.mxu0 %v1200
          %1224 = vmatprep.subr.bf16.mxu0 0
          %1225 = vmatpush2.bf16.msra.mxu0 0
          %1226 = vmatprep.subr.bf16.mxu0 0
          %1227 = vmatpush2.bf16.msra.mxu0 0
          %1228 = vmatprep.subr.bf16.mxu0 0
          %1229 = vmatpush2.bf16.msra.mxu0 0
          %1230 = vmatprep.subr.bf16.mxu0 0
          %1231 = vmatpush2.bf16.msra.mxu0 0
          %1232 = vmatprep.subr.bf16.mxu0 0
          %1233 = vmatpush2.bf16.msra.mxu0 0
          %1234 = vmatprep.subr.bf16.mxu0 0
          %1235 = vmatpush2.bf16.msra.mxu0 0
          %1236 = vmatprep.subr.bf16.mxu0 0
          %1237 = vmatpush2.bf16.msra.mxu0 0
          %1238 = vmatprep.subr.bf16.mxu0 0
          %1239 = vmatpush2.bf16.msra.mxu0 0
          %1240 = vmatprep.mubr.bf16.mxu0 0
          %1241 = vmatmul.mubr.bf16.gmra.mxu0 %v1197
          %v1242 = vpop.f32.mrf.mxu0
          %v1243 = vadd.f32 0.0, %v1242
          %v1244 = vpop.f32.mrf.mxu0
          %v1245 = vadd.f32 0.0, %v1244
          %v1246 = vpop.f32.mrf.mxu0
          %v1247 = vpop.f32.mrf.mxu0
          %1248 = vdwg.mxu0
          %1249 = vmatprep.subr.bf16.mxu0 0
          %1250 = vmatpush1.bf16.msra.mxu0 0
          %1251 = vmatprep.subr.bf16.mxu0 0
          %1252 = vmatpush1.bf16.msra.mxu0 0
          %1253 = vmatprep.subr.bf16.mxu0 0
          %1254 = vmatpush1.bf16.msra.mxu0 0
          %1255 = vmatprep.subr.bf16.mxu0 0
          %1256 = vmatpush1.bf16.msra.mxu0 0
          %1257 = vmatprep.subr.bf16.mxu0 0
          %1258 = vmatpush1.bf16.msra.mxu0 0
          %1259 = vmatprep.subr.bf16.mxu0 0
          %1260 = vmatpush1.bf16.msra.mxu0 0
          %1261 = vmatprep.subr.bf16.mxu0 0
          %1262 = vmatpush1.bf16.msra.mxu0 0
          %1263 = vmatprep.subr.bf16.mxu0 0
          %1264 = vmatpush1.bf16.msra.mxu0 %v1206
          %1265 = vmatprep.subr.bf16.mxu0 0
          %1266 = vmatpush2.bf16.msra.mxu0 0
          %1267 = vmatprep.subr.bf16.mxu0 0
          %1268 = vmatpush2.bf16.msra.mxu0 0
          %1269 = vmatprep.subr.bf16.mxu0 0
          %1270 = vmatpush2.bf16.msra.mxu0 0
          %1271 = vmatprep.subr.bf16.mxu0 0
          %1272 = vmatpush2.bf16.msra.mxu0 0
          %1273 = vmatprep.subr.bf16.mxu0 0
          %1274 = vmatpush2.bf16.msra.mxu0 0
          %1275 = vmatprep.subr.bf16.mxu0 0
          %1276 = vmatpush2.bf16.msra.mxu0 0
          %1277 = vmatprep.subr.bf16.mxu0 0
          %1278 = vmatpush2.bf16.msra.mxu0 0
          %1279 = vmatprep.subr.bf16.mxu0 0
          %1280 = vmatpush2.bf16.msra.mxu0 0
          %1281 = vmatprep.mubr.bf16.mxu0 0
          %1282 = vmatmul.mubr.bf16.gmra.mxu0 %v1197
          %v1283 = vpop.f32.mrf.mxu0
          %v1284 = vadd.f32 0.0, %v1283
          %v1285 = vpop.f32.mrf.mxu0
          %v1286 = vpop.f32.mrf.mxu0
          %v1287 = vpop.f32.mrf.mxu0
          %1288 = vdwg.mxu0
          %v1289 = vadd.f32 %v1160, %v1243
          %v1290 = vadd.f32 %v1161, %v1245
          %v1291 = vadd.f32 %v1162, %v1284
          %v1292 = vld [vmem:[%s263] sm:$0xff]
          %s1293 = scalar_lea.vmem %s1, 32
          %v1294 = vld [vmem:[%s1293] sm:$0xf]
          %v1296 = vcombine.high %v1292, %v1292
          %v1298 = vunpack.c.l.s4 1983009808
          %v1299 = vunpack.c.0.s8 %v1298
          %v1300 = vlaneseq
          %v1301 = vshrl.u32 %v1300, 7
          %v1302 = vsub.s32 %v1299, %v1301
          %v1303 = vrot.slane %v1292, %v1302
          %v1305 = vunpack.c.l.s4 1983009808
          %v1306 = vunpack.c.0.s8 %v1305
          %v1307 = vlaneseq
          %v1308 = vshrl.u32 %v1307, 7
          %v1309 = vsub.s32 %v1306, %v1308
          %v1310 = vrot.slane %v1296, %v1309
          %v1311 = vcombine.high %v1303, %v1303
          %v1312 = vcombine.high %v1310, %v1310
          %1313 = vrot.lane.b32.xlu0 %v1303, 44
          %v1314 = vpop.permute.xlu0 %1313
          %1315 = vrot.lane.b32.xlu0 %v1311, 44
          %v1316 = vpop.permute.xlu0 %1315
          %1317 = vrot.lane.b32.xlu0 %v1310, 44
          %v1318 = vpop.permute.xlu0 %1317
          %1319 = vrot.lane.b32.xlu0 %v1312, 44
          %v1320 = vpop.permute.xlu0 %1319
          %vm1321 = vcmask 359424
          %v1322 = vsel %vm1321, %v1314, %v1316
          %v1323 = vsel %vm1321, %v1316, %v1318
          %v1324 = vsel %vm1321, %v1318, %v1320
          %v1326 = vsel %vm313, %v1294, 0
          %v1329 = vsel %vm317, %v1322, 0
          %v1332 = vsel %vm317, %v1323, 0
          %v1335 = vsel %vm317, %v1324, 0
          %1337 = vmatprep.subr.bf16.mxu0 0
          %1338 = vmatpush1.bf16.msra.mxu0 0
          %1339 = vmatprep.subr.bf16.mxu0 0
          %1340 = vmatpush1.bf16.msra.mxu0 0
          %1341 = vmatprep.subr.bf16.mxu0 0
          %1342 = vmatpush1.bf16.msra.mxu0 0
          %1343 = vmatprep.subr.bf16.mxu0 0
          %1344 = vmatpush1.bf16.msra.mxu0 0
          %1345 = vmatprep.subr.bf16.mxu0 0
          %1346 = vmatpush1.bf16.msra.mxu0 0
          %1347 = vmatprep.subr.bf16.mxu0 0
          %1348 = vmatpush1.bf16.msra.mxu0 0
          %1349 = vmatprep.subr.bf16.mxu0 0
          %1350 = vmatpush1.bf16.msra.mxu0 0
          %1351 = vmatprep.subr.bf16.mxu0 %v1332
          %1352 = vmatpush1.bf16.msra.mxu0 %v1329
          %1353 = vmatprep.subr.bf16.mxu0 0
          %1354 = vmatpush2.bf16.msra.mxu0 0
          %1355 = vmatprep.subr.bf16.mxu0 0
          %1356 = vmatpush2.bf16.msra.mxu0 0
          %1357 = vmatprep.subr.bf16.mxu0 0
          %1358 = vmatpush2.bf16.msra.mxu0 0
          %1359 = vmatprep.subr.bf16.mxu0 0
          %1360 = vmatpush2.bf16.msra.mxu0 0
          %1361 = vmatprep.subr.bf16.mxu0 0
          %1362 = vmatpush2.bf16.msra.mxu0 0
          %1363 = vmatprep.subr.bf16.mxu0 0
          %1364 = vmatpush2.bf16.msra.mxu0 0
          %1365 = vmatprep.subr.bf16.mxu0 0
          %1366 = vmatpush2.bf16.msra.mxu0 0
          %1367 = vmatprep.subr.bf16.mxu0 0
          %1368 = vmatpush2.bf16.msra.mxu0 0
          %1369 = vmatprep.mubr.bf16.mxu0 0
          %1370 = vmatmul.mubr.bf16.gmra.mxu0 %v1326
          %v1371 = vpop.f32.mrf.mxu0
          %v1372 = vadd.f32 0.0, %v1371
          %v1373 = vpop.f32.mrf.mxu0
          %v1374 = vadd.f32 0.0, %v1373
          %v1375 = vpop.f32.mrf.mxu0
          %v1376 = vpop.f32.mrf.mxu0
          %1377 = vdwg.mxu0
          %1378 = vmatprep.subr.bf16.mxu0 0
          %1379 = vmatpush1.bf16.msra.mxu0 0
          %1380 = vmatprep.subr.bf16.mxu0 0
          %1381 = vmatpush1.bf16.msra.mxu0 0
          %1382 = vmatprep.subr.bf16.mxu0 0
          %1383 = vmatpush1.bf16.msra.mxu0 0
          %1384 = vmatprep.subr.bf16.mxu0 0
          %1385 = vmatpush1.bf16.msra.mxu0 0
          %1386 = vmatprep.subr.bf16.mxu0 0
          %1387 = vmatpush1.bf16.msra.mxu0 0
          %1388 = vmatprep.subr.bf16.mxu0 0
          %1389 = vmatpush1.bf16.msra.mxu0 0
          %1390 = vmatprep.subr.bf16.mxu0 0
          %1391 = vmatpush1.bf16.msra.mxu0 0
          %1392 = vmatprep.subr.bf16.mxu0 0
          %1393 = vmatpush1.bf16.msra.mxu0 %v1335
          %1394 = vmatprep.subr.bf16.mxu0 0
          %1395 = vmatpush2.bf16.msra.mxu0 0
          %1396 = vmatprep.subr.bf16.mxu0 0
          %1397 = vmatpush2.bf16.msra.mxu0 0
          %1398 = vmatprep.subr.bf16.mxu0 0
          %1399 = vmatpush2.bf16.msra.mxu0 0
          %1400 = vmatprep.subr.bf16.mxu0 0
          %1401 = vmatpush2.bf16.msra.mxu0 0
          %1402 = vmatprep.subr.bf16.mxu0 0
          %1403 = vmatpush2.bf16.msra.mxu0 0
          %1404 = vmatprep.subr.bf16.mxu0 0
          %1405 = vmatpush2.bf16.msra.mxu0 0
          %1406 = vmatprep.subr.bf16.mxu0 0
          %1407 = vmatpush2.bf16.msra.mxu0 0
          %1408 = vmatprep.subr.bf16.mxu0 0
          %1409 = vmatpush2.bf16.msra.mxu0 0
          %1410 = vmatprep.mubr.bf16.mxu0 0
          %1411 = vmatmul.mubr.bf16.gmra.mxu0 %v1326
          %v1412 = vpop.f32.mrf.mxu0
          %v1413 = vadd.f32 0.0, %v1412
          %v1414 = vpop.f32.mrf.mxu0
          %v1415 = vpop.f32.mrf.mxu0
          %v1416 = vpop.f32.mrf.mxu0
          %1417 = vdwg.mxu0
          %v1418 = vadd.f32 %v1289, %v1372
          %v1419 = vadd.f32 %v1290, %v1374
          %v1420 = vadd.f32 %v1291, %v1413
          %v1421 = vld [vmem:[%s2] sm:$0xff]
          %1423 = vset.pattern.permute.xlu0 0
          %1424 = vperm.xlu0 %1423, %v1421
          %v1425 = vpop.permute.xlu0 %1424
          %v1427 = vadd.f32 %v1418, %v1425
          %v1428 = vadd.f32 %v1419, %v1425
          %v1429 = vadd.f32 %v1420, %v1425
          %v1430 = vld [vmem:[%s5] sm:$0x7]
          %v1432 = vlaneseq
          %v1433 = vshrl.u32 %v1432, 7
          %v1434 = vsub.s32 0, %v1433
          %v1435 = vrot.slane %v1430, %v1434
          %v1436 = vlaneseq
          %v1437 = vshrl.u32 %v1436, 7
          %v1438 = vsub.s32 1, %v1437
          %v1439 = vrot.slane %v1430, %v1438
          %v1440 = vlaneseq
          %v1441 = vshrl.u32 %v1440, 7
          %v1442 = vsub.s32 2, %v1441
          %v1443 = vrot.slane %v1430, %v1442
          %v1447 = vmul.f32 %v1427, %v1435
          %v1448 = vmul.f32 %v1428, %v1439
          %v1449 = vmul.f32 %v1429, %v1443
          %v1450 = vld [vmem:[#allocation2] sm:$0xff]
          %v1451 = vadd.f32 %v1447, %v1448
          %v1452 = vadd.f32 %v1451, %v1449
          %1453 = vadd.xlane.f32.xlu0 %v1452
          %v1454 = vpop.xlane.xlu0 %1453
          %v1455 = vadd.f32 %v1450, %v1454
          %vm1456 = vcmask 7168
          %1457 = vst.msk [vmem:[#allocation2] sm:$0xff] %vm1456, %v1455
          %v1458 = vld [vmem:[#allocation3] sm:$0xff]
          %v1459 = vmul.f32 %v1447, %v1447
          %v1460 = vmul.f32 %v1448, %v1448
          %v1461 = vmul.f32 %v1449, %v1449
          %v1462 = vadd.f32 %v1459, %v1460
          %v1463 = vadd.f32 %v1462, %v1461
          %1464 = vadd.xlane.f32.xlu0 %v1463
          %v1465 = vpop.xlane.xlu0 %1464
          %v1466 = vadd.f32 %v1458, %v1465
          %1467 = vst.msk [vmem:[#allocation3] sm:$0xff] %vm1456, %v1466
        $region52: #{tpu_custom_call.1} parent=43 // pred_fallthru
          _
        %p1468 = scmp.eq.s32.totalorder %s24, 1
        %p1469 = pnand %p1468, %p267
        %p1470 = pneg %p1469
        // Predicated region
        $region53: #{tpu_custom_call.1} parent=43 // pred_check
          _
        $region54: #{tpu_custom_call.1} parent=43 // pred_check_branch
          %1472 = sbr.rel (%p1469) target = $region56
        $region55: #{tpu_custom_call.1} parent=43 // pred_region
          %v1473 = vld [vmem:[#allocation2] sm:$0xff]
          %v1474 = vmul.f32 %v1473, 0.001953125
          %v1475 = vld [vmem:[#allocation3] sm:$0xff]
          %v1476 = vmul.f32 %v1475, 0.001953125
          %v1477 = vmul.f32 %v1474, %v1474
          %v1478 = vsub.f32 %v1476, %v1477
          %v1479 = vmax.f32 %v1478, 0.0
          %v1480 = vadd.f32 %v1479, 1e-05
          %v1481 = vrsqrt.pop %v1480
          %v1482 = vld [vmem:[%s3] sm:$0xff]
          %v1483 = vmul.f32 %v1482, %v1481
          %vm1484 = vcmask 7168
          %1485 = vst.msk [vmem:[#allocation4] sm:$0xff] %vm1484, %v1483
          %v1486 = vld [vmem:[%s4] sm:$0xff]
          %v1487 = vmul.f32 %v1474, %v1483
          %v1488 = vsub.f32 %v1486, %v1487
          %1489 = vst.msk [vmem:[#allocation5] sm:$0xff] %vm1484, %v1488
        $region56: #{tpu_custom_call.1} parent=43 // pred_fallthru
          _
        // Predicated region
        $region57: #{tpu_custom_call.1} parent=43 // pred_check
          %p1490 = pneg %p1468
        $region58: #{tpu_custom_call.1} parent=43 // pred_check_branch
          %1492 = sbr.rel (%p1490) target = $region60
        $region59: #{tpu_custom_call.1} parent=43 // pred_region
          %v1493 = vld [vmem:[%s263] sm:$0x3f]
          %v1494 = vld [vmem:[%s1] sm:$0xf]
          %v1495 = vld [vmem:[%s263] sm:$0xff]
          %s1496 = scalar_lea.vmem %s1, 4
          %v1497 = vld [vmem:[%s1496] sm:$0xf]
          %v1499 = vcombine.high %v1495, %v1495
          %v1501 = vunpack.c.l.s4 1983009808
          %v1502 = vunpack.c.0.s8 %v1501
          %v1503 = vlaneseq
          %v1504 = vshrl.u32 %v1503, 7
          %v1505 = vsub.s32 %v1502, %v1504
          %v1506 = vrot.slane %v1495, %v1505
          %v1508 = vunpack.c.l.s4 1983009808
          %v1509 = vunpack.c.0.s8 %v1508
          %v1510 = vlaneseq
          %v1511 = vshrl.u32 %v1510, 7
          %v1512 = vsub.s32 %v1509, %v1511
          %v1513 = vrot.slane %v1499, %v1512
          %v1514 = vcombine.high %v1506, %v1506
          %v1515 = vcombine.high %v1513, %v1513
          %1516 = vrot.lane.b32.xlu0 %v1506, 126
          %v1517 = vpop.permute.xlu0 %1516
          %1518 = vrot.lane.b32.xlu0 %v1514, 126
          %v1519 = vpop.permute.xlu0 %1518
          %1520 = vrot.lane.b32.xlu0 %v1513, 126
          %v1521 = vpop.permute.xlu0 %1520
          %1522 = vrot.lane.b32.xlu0 %v1515, 126
          %v1523 = vpop.permute.xlu0 %1522
          %vm1524 = vcmask 1031168
          %v1525 = vsel %vm1524, %v1517, %v1519
          %v1526 = vsel %vm1524, %v1519, %v1521
          %v1527 = vsel %vm1524, %v1521, %v1523
          %vm1528 = vcmask 31744
          %v1530 = vsel %vm1528, %v1497, 0
          %vm1532 = vcmask 1041408
          %v1534 = vsel %vm1532, %v1525, 0
          %v1537 = vsel %vm1532, %v1526, 0
          %v1540 = vsel %vm1532, %v1527, 0
          %1542 = vmatprep.subr.bf16.mxu0 0
          %1543 = vmatpush1.bf16.msra.mxu0 0
          %1544 = vmatprep.subr.bf16.mxu0 0
          %1545 = vmatpush1.bf16.msra.mxu0 0
          %1546 = vmatprep.subr.bf16.mxu0 0
          %1547 = vmatpush1.bf16.msra.mxu0 0
          %1548 = vmatprep.subr.bf16.mxu0 0
          %1549 = vmatpush1.bf16.msra.mxu0 0
          %1550 = vmatprep.subr.bf16.mxu0 0
          %1551 = vmatpush1.bf16.msra.mxu0 0
          %1552 = vmatprep.subr.bf16.mxu0 0
          %1553 = vmatpush1.bf16.msra.mxu0 0
          %1554 = vmatprep.subr.bf16.mxu0 0
          %1555 = vmatpush1.bf16.msra.mxu0 0
          %1556 = vmatprep.subr.bf16.mxu0 %v1537
          %1557 = vmatpush1.bf16.msra.mxu0 %v1534
          %1558 = vmatprep.subr.bf16.mxu0 0
          %1559 = vmatpush2.bf16.msra.mxu0 0
          %1560 = vmatprep.subr.bf16.mxu0 0
          %1561 = vmatpush2.bf16.msra.mxu0 0
          %1562 = vmatprep.subr.bf16.mxu0 0
          %1563 = vmatpush2.bf16.msra.mxu0 0
          %1564 = vmatprep.subr.bf16.mxu0 0
          %1565 = vmatpush2.bf16.msra.mxu0 0
          %1566 = vmatprep.subr.bf16.mxu0 0
          %1567 = vmatpush2.bf16.msra.mxu0 0
          %1568 = vmatprep.subr.bf16.mxu0 0
          %1569 = vmatpush2.bf16.msra.mxu0 0
          %1570 = vmatprep.subr.bf16.mxu0 0
          %1571 = vmatpush2.bf16.msra.mxu0 0
          %1572 = vmatprep.subr.bf16.mxu0 0
          %1573 = vmatpush2.bf16.msra.mxu0 0
          %1574 = vmatprep.mubr.bf16.mxu0 0
          %1575 = vmatmul.mubr.bf16.gmra.mxu0 %v1530
          %v1576 = vpop.f32.mrf.mxu0
          %v1577 = vadd.f32 0.0, %v1576
          %v1578 = vpop.f32.mrf.mxu0
          %v1579 = vadd.f32 0.0, %v1578
          %v1580 = vpop.f32.mrf.mxu0
          %v1581 = vpop.f32.mrf.mxu0
          %1582 = vdwg.mxu0
          %1583 = vmatprep.subr.bf16.mxu0 0
          %1584 = vmatpush1.bf16.msra.mxu0 0
          %1585 = vmatprep.subr.bf16.mxu0 0
          %1586 = vmatpush1.bf16.msra.mxu0 0
          %1587 = vmatprep.subr.bf16.mxu0 0
          %1588 = vmatpush1.bf16.msra.mxu0 0
          %1589 = vmatprep.subr.bf16.mxu0 0
          %1590 = vmatpush1.bf16.msra.mxu0 0
          %1591 = vmatprep.subr.bf16.mxu0 0
          %1592 = vmatpush1.bf16.msra.mxu0 0
          %1593 = vmatprep.subr.bf16.mxu0 0
          %1594 = vmatpush1.bf16.msra.mxu0 0
          %1595 = vmatprep.subr.bf16.mxu0 0
          %1596 = vmatpush1.bf16.msra.mxu0 0
          %1597 = vmatprep.subr.bf16.mxu0 0
          %1598 = vmatpush1.bf16.msra.mxu0 %v1540
          %1599 = vmatprep.subr.bf16.mxu0 0
          %1600 = vmatpush2.bf16.msra.mxu0 0
          %1601 = vmatprep.subr.bf16.mxu0 0
          %1602 = vmatpush2.bf16.msra.mxu0 0
          %1603 = vmatprep.subr.bf16.mxu0 0
          %1604 = vmatpush2.bf16.msra.mxu0 0
          %1605 = vmatprep.subr.bf16.mxu0 0
          %1606 = vmatpush2.bf16.msra.mxu0 0
          %1607 = vmatprep.subr.bf16.mxu0 0
          %1608 = vmatpush2.bf16.msra.mxu0 0
          %1609 = vmatprep.subr.bf16.mxu0 0
          %1610 = vmatpush2.bf16.msra.mxu0 0
          %1611 = vmatprep.subr.bf16.mxu0 0
          %1612 = vmatpush2.bf16.msra.mxu0 0
          %1613 = vmatprep.subr.bf16.mxu0 0
          %1614 = vmatpush2.bf16.msra.mxu0 0
          %1615 = vmatprep.mubr.bf16.mxu0 0
          %1616 = vmatmul.mubr.bf16.gmra.mxu0 %v1530
          %v1617 = vpop.f32.mrf.mxu0
          %v1618 = vadd.f32 0.0, %v1617
          %v1619 = vpop.f32.mrf.mxu0
          %v1620 = vpop.f32.mrf.mxu0
          %v1621 = vpop.f32.mrf.mxu0
          %1622 = vdwg.mxu0
          %v1624 = vcombine.high %v1493, %v1493
          %v1626 = vunpack.c.l.s4 1983009808
          %v1627 = vunpack.c.0.s8 %v1626
          %v1628 = vlaneseq
          %v1629 = vshrl.u32 %v1628, 7
          %v1630 = vsub.s32 %v1627, %v1629
          %v1631 = vrot.slane %v1493, %v1630
          %v1633 = vunpack.c.l.s4 1983009808
          %v1634 = vunpack.c.0.s8 %v1633
          %v1635 = vlaneseq
          %v1636 = vshrl.u32 %v1635, 7
          %v1637 = vsub.s32 %v1634, %v1636
          %v1638 = vrot.slane %v1624, %v1637
          %v1639 = vcombine.high %v1631, %v1631
          %v1641 = vsel %vm1528, %v1494, 0
          %v1644 = vsel %vm1532, %v1631, 0
          %v1647 = vsel %vm1532, %v1639, 0
          %v1650 = vsel %vm1532, %v1638, 0
          %1652 = vmatprep.subr.bf16.mxu0 0
          %1653 = vmatpush1.bf16.msra.mxu0 0
          %1654 = vmatprep.subr.bf16.mxu0 0
          %1655 = vmatpush1.bf16.msra.mxu0 0
          %1656 = vmatprep.subr.bf16.mxu0 0
          %1657 = vmatpush1.bf16.msra.mxu0 0
          %1658 = vmatprep.subr.bf16.mxu0 0
          %1659 = vmatpush1.bf16.msra.mxu0 0
          %1660 = vmatprep.subr.bf16.mxu0 0
          %1661 = vmatpush1.bf16.msra.mxu0 0
          %1662 = vmatprep.subr.bf16.mxu0 0
          %1663 = vmatpush1.bf16.msra.mxu0 0
          %1664 = vmatprep.subr.bf16.mxu0 0
          %1665 = vmatpush1.bf16.msra.mxu0 0
          %1666 = vmatprep.subr.bf16.mxu0 %v1647
          %1667 = vmatpush1.bf16.msra.mxu0 %v1644
          %1668 = vmatprep.subr.bf16.mxu0 0
          %1669 = vmatpush2.bf16.msra.mxu0 0
          %1670 = vmatprep.subr.bf16.mxu0 0
          %1671 = vmatpush2.bf16.msra.mxu0 0
          %1672 = vmatprep.subr.bf16.mxu0 0
          %1673 = vmatpush2.bf16.msra.mxu0 0
          %1674 = vmatprep.subr.bf16.mxu0 0
          %1675 = vmatpush2.bf16.msra.mxu0 0
          %1676 = vmatprep.subr.bf16.mxu0 0
          %1677 = vmatpush2.bf16.msra.mxu0 0
          %1678 = vmatprep.subr.bf16.mxu0 0
          %1679 = vmatpush2.bf16.msra.mxu0 0
          %1680 = vmatprep.subr.bf16.mxu0 0
          %1681 = vmatpush2.bf16.msra.mxu0 0
          %1682 = vmatprep.subr.bf16.mxu0 0
          %1683 = vmatpush2.bf16.msra.mxu0 0
          %1684 = vmatprep.mubr.bf16.mxu0 0
          %1685 = vmatmul.mubr.bf16.gmra.mxu0 %v1641
          %v1686 = vpop.f32.mrf.mxu0
          %v1687 = vadd.f32 %v1577, %v1686
          %v1688 = vpop.f32.mrf.mxu0
          %v1689 = vadd.f32 %v1579, %v1688
          %v1690 = vpop.f32.mrf.mxu0
          %v1691 = vpop.f32.mrf.mxu0
          %1692 = vdwg.mxu0
          %1693 = vmatprep.subr.bf16.mxu0 0
          %1694 = vmatpush1.bf16.msra.mxu0 0
          %1695 = vmatprep.subr.bf16.mxu0 0
          %1696 = vmatpush1.bf16.msra.mxu0 0
          %1697 = vmatprep.subr.bf16.mxu0 0
          %1698 = vmatpush1.bf16.msra.mxu0 0
          %1699 = vmatprep.subr.bf16.mxu0 0
          %1700 = vmatpush1.bf16.msra.mxu0 0
          %1701 = vmatprep.subr.bf16.mxu0 0
          %1702 = vmatpush1.bf16.msra.mxu0 0
          %1703 = vmatprep.subr.bf16.mxu0 0
          %1704 = vmatpush1.bf16.msra.mxu0 0
          %1705 = vmatprep.subr.bf16.mxu0 0
          %1706 = vmatpush1.bf16.msra.mxu0 0
          %1707 = vmatprep.subr.bf16.mxu0 0
          %1708 = vmatpush1.bf16.msra.mxu0 %v1650
          %1709 = vmatprep.subr.bf16.mxu0 0
          %1710 = vmatpush2.bf16.msra.mxu0 0
          %1711 = vmatprep.subr.bf16.mxu0 0
          %1712 = vmatpush2.bf16.msra.mxu0 0
          %1713 = vmatprep.subr.bf16.mxu0 0
          %1714 = vmatpush2.bf16.msra.mxu0 0
          %1715 = vmatprep.subr.bf16.mxu0 0
          %1716 = vmatpush2.bf16.msra.mxu0 0
          %1717 = vmatprep.subr.bf16.mxu0 0
          %1718 = vmatpush2.bf16.msra.mxu0 0
          %1719 = vmatprep.subr.bf16.mxu0 0
          %1720 = vmatpush2.bf16.msra.mxu0 0
          %1721 = vmatprep.subr.bf16.mxu0 0
          %1722 = vmatpush2.bf16.msra.mxu0 0
          %1723 = vmatprep.subr.bf16.mxu0 0
          %1724 = vmatpush2.bf16.msra.mxu0 0
          %1725 = vmatprep.mubr.bf16.mxu0 0
          %1726 = vmatmul.mubr.bf16.gmra.mxu0 %v1641
          %v1727 = vpop.f32.mrf.mxu0
          %v1728 = vadd.f32 %v1618, %v1727
          %v1729 = vpop.f32.mrf.mxu0
          %v1730 = vpop.f32.mrf.mxu0
          %v1731 = vpop.f32.mrf.mxu0
          %1732 = vdwg.mxu0
          %v1733 = vld [vmem:[%s263] sm:$0xff]
          %s1734 = scalar_lea.vmem %s1, 8
          %v1735 = vld [vmem:[%s1734] sm:$0xf]
          %v1737 = vcombine.high %v1733, %v1733
          %v1739 = vunpack.c.l.s4 1983009808
          %v1740 = vunpack.c.0.s8 %v1739
          %v1741 = vlaneseq
          %v1742 = vshrl.u32 %v1741, 7
          %v1743 = vsub.s32 %v1740, %v1742
          %v1744 = vrot.slane %v1733, %v1743
          %v1746 = vunpack.c.l.s4 1983009808
          %v1747 = vunpack.c.0.s8 %v1746
          %v1748 = vlaneseq
          %v1749 = vshrl.u32 %v1748, 7
          %v1750 = vsub.s32 %v1747, %v1749
          %v1751 = vrot.slane %v1737, %v1750
          %v1752 = vcombine.high %v1744, %v1744
          %v1753 = vcombine.high %v1751, %v1751
          %1754 = vrot.lane.b32.xlu0 %v1744, 124
          %v1755 = vpop.permute.xlu0 %1754
          %1756 = vrot.lane.b32.xlu0 %v1752, 124
          %v1757 = vpop.permute.xlu0 %1756
          %1758 = vrot.lane.b32.xlu0 %v1751, 124
          %v1759 = vpop.permute.xlu0 %1758
          %1760 = vrot.lane.b32.xlu0 %v1753, 124
          %v1761 = vpop.permute.xlu0 %1760
          %vm1762 = vcmask 1014784
          %v1763 = vsel %vm1762, %v1755, %v1757
          %v1764 = vsel %vm1762, %v1757, %v1759
          %v1765 = vsel %vm1762, %v1759, %v1761
          %v1767 = vsel %vm1528, %v1735, 0
          %v1770 = vsel %vm1532, %v1763, 0
          %v1773 = vsel %vm1532, %v1764, 0
          %v1776 = vsel %vm1532, %v1765, 0
          %1778 = vmatprep.subr.bf16.mxu0 0
          %1779 = vmatpush1.bf16.msra.mxu0 0
          %1780 = vmatprep.subr.bf16.mxu0 0
          %1781 = vmatpush1.bf16.msra.mxu0 0
          %1782 = vmatprep.subr.bf16.mxu0 0
          %1783 = vmatpush1.bf16.msra.mxu0 0
          %1784 = vmatprep.subr.bf16.mxu0 0
          %1785 = vmatpush1.bf16.msra.mxu0 0
          %1786 = vmatprep.subr.bf16.mxu0 0
          %1787 = vmatpush1.bf16.msra.mxu0 0
          %1788 = vmatprep.subr.bf16.mxu0 0
          %1789 = vmatpush1.bf16.msra.mxu0 0
          %1790 = vmatprep.subr.bf16.mxu0 0
          %1791 = vmatpush1.bf16.msra.mxu0 0
          %1792 = vmatprep.subr.bf16.mxu0 %v1773
          %1793 = vmatpush1.bf16.msra.mxu0 %v1770
          %1794 = vmatprep.subr.bf16.mxu0 0
          %1795 = vmatpush2.bf16.msra.mxu0 0
          %1796 = vmatprep.subr.bf16.mxu0 0
          %1797 = vmatpush2.bf16.msra.mxu0 0
          %1798 = vmatprep.subr.bf16.mxu0 0
          %1799 = vmatpush2.bf16.msra.mxu0 0
          %1800 = vmatprep.subr.bf16.mxu0 0
          %1801 = vmatpush2.bf16.msra.mxu0 0
          %1802 = vmatprep.subr.bf16.mxu0 0
          %1803 = vmatpush2.bf16.msra.mxu0 0
          %1804 = vmatprep.subr.bf16.mxu0 0
          %1805 = vmatpush2.bf16.msra.mxu0 0
          %1806 = vmatprep.subr.bf16.mxu0 0
          %1807 = vmatpush2.bf16.msra.mxu0 0
          %1808 = vmatprep.subr.bf16.mxu0 0
          %1809 = vmatpush2.bf16.msra.mxu0 0
          %1810 = vmatprep.mubr.bf16.mxu0 0
          %1811 = vmatmul.mubr.bf16.gmra.mxu0 %v1767
          %v1812 = vpop.f32.mrf.mxu0
          %v1813 = vadd.f32 0.0, %v1812
          %v1814 = vpop.f32.mrf.mxu0
          %v1815 = vadd.f32 0.0, %v1814
          %v1816 = vpop.f32.mrf.mxu0
          %v1817 = vpop.f32.mrf.mxu0
          %1818 = vdwg.mxu0
          %1819 = vmatprep.subr.bf16.mxu0 0
          %1820 = vmatpush1.bf16.msra.mxu0 0
          %1821 = vmatprep.subr.bf16.mxu0 0
          %1822 = vmatpush1.bf16.msra.mxu0 0
          %1823 = vmatprep.subr.bf16.mxu0 0
          %1824 = vmatpush1.bf16.msra.mxu0 0
          %1825 = vmatprep.subr.bf16.mxu0 0
          %1826 = vmatpush1.bf16.msra.mxu0 0
          %1827 = vmatprep.subr.bf16.mxu0 0
          %1828 = vmatpush1.bf16.msra.mxu0 0
          %1829 = vmatprep.subr.bf16.mxu0 0
          %1830 = vmatpush1.bf16.msra.mxu0 0
          %1831 = vmatprep.subr.bf16.mxu0 0
          %1832 = vmatpush1.bf16.msra.mxu0 0
          %1833 = vmatprep.subr.bf16.mxu0 0
          %1834 = vmatpush1.bf16.msra.mxu0 %v1776
          %1835 = vmatprep.subr.bf16.mxu0 0
          %1836 = vmatpush2.bf16.msra.mxu0 0
          %1837 = vmatprep.subr.bf16.mxu0 0
          %1838 = vmatpush2.bf16.msra.mxu0 0
          %1839 = vmatprep.subr.bf16.mxu0 0
          %1840 = vmatpush2.bf16.msra.mxu0 0
          %1841 = vmatprep.subr.bf16.mxu0 0
          %1842 = vmatpush2.bf16.msra.mxu0 0
          %1843 = vmatprep.subr.bf16.mxu0 0
          %1844 = vmatpush2.bf16.msra.mxu0 0
          %1845 = vmatprep.subr.bf16.mxu0 0
          %1846 = vmatpush2.bf16.msra.mxu0 0
          %1847 = vmatprep.subr.bf16.mxu0 0
          %1848 = vmatpush2.bf16.msra.mxu0 0
          %1849 = vmatprep.subr.bf16.mxu0 0
          %1850 = vmatpush2.bf16.msra.mxu0 0
          %1851 = vmatprep.mubr.bf16.mxu0 0
          %1852 = vmatmul.mubr.bf16.gmra.mxu0 %v1767
          %v1853 = vpop.f32.mrf.mxu0
          %v1854 = vadd.f32 0.0, %v1853
          %v1855 = vpop.f32.mrf.mxu0
          %v1856 = vpop.f32.mrf.mxu0
          %v1857 = vpop.f32.mrf.mxu0
          %1858 = vdwg.mxu0
          %v1859 = vadd.f32 %v1687, %v1813
          %v1860 = vadd.f32 %v1689, %v1815
          %v1861 = vadd.f32 %v1728, %v1854
          %v1862 = vld [vmem:[%s263] sm:$0xff]
          %s1863 = scalar_lea.vmem %s1, 12
          %v1864 = vld [vmem:[%s1863] sm:$0xf]
          %v1866 = vcombine.high %v1862, %v1862
          %v1868 = vunpack.c.l.s4 1983009808
          %v1869 = vunpack.c.0.s8 %v1868
          %v1870 = vlaneseq
          %v1871 = vshrl.u32 %v1870, 7
          %v1872 = vsub.s32 %v1869, %v1871
          %v1873 = vrot.slane %v1862, %v1872
          %v1875 = vunpack.c.l.s4 1983009808
          %v1876 = vunpack.c.0.s8 %v1875
          %v1877 = vlaneseq
          %v1878 = vshrl.u32 %v1877, 7
          %v1879 = vsub.s32 %v1876, %v1878
          %v1880 = vrot.slane %v1866, %v1879
          %v1881 = vcombine.high %v1873, %v1873
          %v1882 = vcombine.high %v1880, %v1880
          %1883 = vrot.lane.b32.xlu0 %v1873, 88
          %v1884 = vpop.permute.xlu0 %1883
          %1885 = vrot.lane.b32.xlu0 %v1881, 88
          %v1886 = vpop.permute.xlu0 %1885
          %1887 = vrot.lane.b32.xlu0 %v1880, 88
          %v1888 = vpop.permute.xlu0 %1887
          %1889 = vrot.lane.b32.xlu0 %v1882, 88
          %v1890 = vpop.permute.xlu0 %1889
          %vm1891 = vcmask 719872
          %v1892 = vsel %vm1891, %v1884, %v1886
          %v1893 = vsel %vm1891, %v1886, %v1888
          %v1894 = vsel %vm1891, %v1888, %v1890
          %v1896 = vsel %vm1528, %v1864, 0
          %v1899 = vsel %vm1532, %v1892, 0
          %v1902 = vsel %vm1532, %v1893, 0
          %v1905 = vsel %vm1532, %v1894, 0
          %1907 = vmatprep.subr.bf16.mxu0 0
          %1908 = vmatpush1.bf16.msra.mxu0 0
          %1909 = vmatprep.subr.bf16.mxu0 0
          %1910 = vmatpush1.bf16.msra.mxu0 0
          %1911 = vmatprep.subr.bf16.mxu0 0
          %1912 = vmatpush1.bf16.msra.mxu0 0
          %1913 = vmatprep.subr.bf16.mxu0 0
          %1914 = vmatpush1.bf16.msra.mxu0 0
          %1915 = vmatprep.subr.bf16.mxu0 0
          %1916 = vmatpush1.bf16.msra.mxu0 0
          %1917 = vmatprep.subr.bf16.mxu0 0
          %1918 = vmatpush1.bf16.msra.mxu0 0
          %1919 = vmatprep.subr.bf16.mxu0 0
          %1920 = vmatpush1.bf16.msra.mxu0 0
          %1921 = vmatprep.subr.bf16.mxu0 %v1902
          %1922 = vmatpush1.bf16.msra.mxu0 %v1899
          %1923 = vmatprep.subr.bf16.mxu0 0
          %1924 = vmatpush2.bf16.msra.mxu0 0
          %1925 = vmatprep.subr.bf16.mxu0 0
          %1926 = vmatpush2.bf16.msra.mxu0 0
          %1927 = vmatprep.subr.bf16.mxu0 0
          %1928 = vmatpush2.bf16.msra.mxu0 0
          %1929 = vmatprep.subr.bf16.mxu0 0
          %1930 = vmatpush2.bf16.msra.mxu0 0
          %1931 = vmatprep.subr.bf16.mxu0 0
          %1932 = vmatpush2.bf16.msra.mxu0 0
          %1933 = vmatprep.subr.bf16.mxu0 0
          %1934 = vmatpush2.bf16.msra.mxu0 0
          %1935 = vmatprep.subr.bf16.mxu0 0
          %1936 = vmatpush2.bf16.msra.mxu0 0
          %1937 = vmatprep.subr.bf16.mxu0 0
          %1938 = vmatpush2.bf16.msra.mxu0 0
          %1939 = vmatprep.mubr.bf16.mxu0 0
          %1940 = vmatmul.mubr.bf16.gmra.mxu0 %v1896
          %v1941 = vpop.f32.mrf.mxu0
          %v1942 = vadd.f32 0.0, %v1941
          %v1943 = vpop.f32.mrf.mxu0
          %v1944 = vadd.f32 0.0, %v1943
          %v1945 = vpop.f32.mrf.mxu0
          %v1946 = vpop.f32.mrf.mxu0
          %1947 = vdwg.mxu0
          %1948 = vmatprep.subr.bf16.mxu0 0
          %1949 = vmatpush1.bf16.msra.mxu0 0
          %1950 = vmatprep.subr.bf16.mxu0 0
          %1951 = vmatpush1.bf16.msra.mxu0 0
          %1952 = vmatprep.subr.bf16.mxu0 0
          %1953 = vmatpush1.bf16.msra.mxu0 0
          %1954 = vmatprep.subr.bf16.mxu0 0
          %1955 = vmatpush1.bf16.msra.mxu0 0
          %1956 = vmatprep.subr.bf16.mxu0 0
          %1957 = vmatpush1.bf16.msra.mxu0 0
          %1958 = vmatprep.subr.bf16.mxu0 0
          %1959 = vmatpush1.bf16.msra.mxu0 0
          %1960 = vmatprep.subr.bf16.mxu0 0
          %1961 = vmatpush1.bf16.msra.mxu0 0
          %1962 = vmatprep.subr.bf16.mxu0 0
          %1963 = vmatpush1.bf16.msra.mxu0 %v1905
          %1964 = vmatprep.subr.bf16.mxu0 0
          %1965 = vmatpush2.bf16.msra.mxu0 0
          %1966 = vmatprep.subr.bf16.mxu0 0
          %1967 = vmatpush2.bf16.msra.mxu0 0
          %1968 = vmatprep.subr.bf16.mxu0 0
          %1969 = vmatpush2.bf16.msra.mxu0 0
          %1970 = vmatprep.subr.bf16.mxu0 0
          %1971 = vmatpush2.bf16.msra.mxu0 0
          %1972 = vmatprep.subr.bf16.mxu0 0
          %1973 = vmatpush2.bf16.msra.mxu0 0
          %1974 = vmatprep.subr.bf16.mxu0 0
          %1975 = vmatpush2.bf16.msra.mxu0 0
          %1976 = vmatprep.subr.bf16.mxu0 0
          %1977 = vmatpush2.bf16.msra.mxu0 0
          %1978 = vmatprep.subr.bf16.mxu0 0
          %1979 = vmatpush2.bf16.msra.mxu0 0
          %1980 = vmatprep.mubr.bf16.mxu0 0
          %1981 = vmatmul.mubr.bf16.gmra.mxu0 %v1896
          %v1982 = vpop.f32.mrf.mxu0
          %v1983 = vadd.f32 0.0, %v1982
          %v1984 = vpop.f32.mrf.mxu0
          %v1985 = vpop.f32.mrf.mxu0
          %v1986 = vpop.f32.mrf.mxu0
          %1987 = vdwg.mxu0
          %v1988 = vadd.f32 %v1859, %v1942
          %v1989 = vadd.f32 %v1860, %v1944
          %v1990 = vadd.f32 %v1861, %v1983
          %v1991 = vld [vmem:[%s263] sm:$0xff]
          %s1992 = scalar_lea.vmem %s1, 16
          %v1993 = vld [vmem:[%s1992] sm:$0xf]
          %v1995 = vcombine.high %v1991, %v1991
          %v1997 = vunpack.c.l.s4 1983009808
          %v1998 = vunpack.c.0.s8 %v1997
          %v1999 = vlaneseq
          %v2000 = vshrl.u32 %v1999, 7
          %v2001 = vsub.s32 %v1998, %v2000
          %v2002 = vrot.slane %v1991, %v2001
          %v2004 = vunpack.c.l.s4 1983009808
          %v2005 = vunpack.c.0.s8 %v2004
          %v2006 = vlaneseq
          %v2007 = vshrl.u32 %v2006, 7
          %v2008 = vsub.s32 %v2005, %v2007
          %v2009 = vrot.slane %v1995, %v2008
          %v2010 = vcombine.high %v2002, %v2002
          %v2011 = vcombine.high %v2009, %v2009
          %2012 = vrot.lane.b32.xlu0 %v2002, 86
          %v2013 = vpop.permute.xlu0 %2012
          %2014 = vrot.lane.b32.xlu0 %v2010, 86
          %v2015 = vpop.permute.xlu0 %2014
          %2016 = vrot.lane.b32.xlu0 %v2009, 86
          %v2017 = vpop.permute.xlu0 %2016
          %2018 = vrot.lane.b32.xlu0 %v2011, 86
          %v2019 = vpop.permute.xlu0 %2018
          %vm2020 = vcmask 703488
          %v2021 = vsel %vm2020, %v2013, %v2015
          %v2022 = vsel %vm2020, %v2015, %v2017
          %v2023 = vsel %vm2020, %v2017, %v2019
          %v2025 = vsel %vm1528, %v1993, 0
          %v2028 = vsel %vm1532, %v2021, 0
          %v2031 = vsel %vm1532, %v2022, 0
          %v2034 = vsel %vm1532, %v2023, 0
          %2036 = vmatprep.subr.bf16.mxu0 0
          %2037 = vmatpush1.bf16.msra.mxu0 0
          %2038 = vmatprep.subr.bf16.mxu0 0
          %2039 = vmatpush1.bf16.msra.mxu0 0
          %2040 = vmatprep.subr.bf16.mxu0 0
          %2041 = vmatpush1.bf16.msra.mxu0 0
          %2042 = vmatprep.subr.bf16.mxu0 0
          %2043 = vmatpush1.bf16.msra.mxu0 0
          %2044 = vmatprep.subr.bf16.mxu0 0
          %2045 = vmatpush1.bf16.msra.mxu0 0
          %2046 = vmatprep.subr.bf16.mxu0 0
          %2047 = vmatpush1.bf16.msra.mxu0 0
          %2048 = vmatprep.subr.bf16.mxu0 0
          %2049 = vmatpush1.bf16.msra.mxu0 0
          %2050 = vmatprep.subr.bf16.mxu0 %v2031
          %2051 = vmatpush1.bf16.msra.mxu0 %v2028
          %2052 = vmatprep.subr.bf16.mxu0 0
          %2053 = vmatpush2.bf16.msra.mxu0 0
          %2054 = vmatprep.subr.bf16.mxu0 0
          %2055 = vmatpush2.bf16.msra.mxu0 0
          %2056 = vmatprep.subr.bf16.mxu0 0
          %2057 = vmatpush2.bf16.msra.mxu0 0
          %2058 = vmatprep.subr.bf16.mxu0 0
          %2059 = vmatpush2.bf16.msra.mxu0 0
          %2060 = vmatprep.subr.bf16.mxu0 0
          %2061 = vmatpush2.bf16.msra.mxu0 0
          %2062 = vmatprep.subr.bf16.mxu0 0
          %2063 = vmatpush2.bf16.msra.mxu0 0
          %2064 = vmatprep.subr.bf16.mxu0 0
          %2065 = vmatpush2.bf16.msra.mxu0 0
          %2066 = vmatprep.subr.bf16.mxu0 0
          %2067 = vmatpush2.bf16.msra.mxu0 0
          %2068 = vmatprep.mubr.bf16.mxu0 0
          %2069 = vmatmul.mubr.bf16.gmra.mxu0 %v2025
          %v2070 = vpop.f32.mrf.mxu0
          %v2071 = vadd.f32 0.0, %v2070
          %v2072 = vpop.f32.mrf.mxu0
          %v2073 = vadd.f32 0.0, %v2072
          %v2074 = vpop.f32.mrf.mxu0
          %v2075 = vpop.f32.mrf.mxu0
          %2076 = vdwg.mxu0
          %2077 = vmatprep.subr.bf16.mxu0 0
          %2078 = vmatpush1.bf16.msra.mxu0 0
          %2079 = vmatprep.subr.bf16.mxu0 0
          %2080 = vmatpush1.bf16.msra.mxu0 0
          %2081 = vmatprep.subr.bf16.mxu0 0
          %2082 = vmatpush1.bf16.msra.mxu0 0
          %2083 = vmatprep.subr.bf16.mxu0 0
          %2084 = vmatpush1.bf16.msra.mxu0 0
          %2085 = vmatprep.subr.bf16.mxu0 0
          %2086 = vmatpush1.bf16.msra.mxu0 0
          %2087 = vmatprep.subr.bf16.mxu0 0
          %2088 = vmatpush1.bf16.msra.mxu0 0
          %2089 = vmatprep.subr.bf16.mxu0 0
          %2090 = vmatpush1.bf16.msra.mxu0 0
          %2091 = vmatprep.subr.bf16.mxu0 0
          %2092 = vmatpush1.bf16.msra.mxu0 %v2034
          %2093 = vmatprep.subr.bf16.mxu0 0
          %2094 = vmatpush2.bf16.msra.mxu0 0
          %2095 = vmatprep.subr.bf16.mxu0 0
          %2096 = vmatpush2.bf16.msra.mxu0 0
          %2097 = vmatprep.subr.bf16.mxu0 0
          %2098 = vmatpush2.bf16.msra.mxu0 0
          %2099 = vmatprep.subr.bf16.mxu0 0
          %2100 = vmatpush2.bf16.msra.mxu0 0
          %2101 = vmatprep.subr.bf16.mxu0 0
          %2102 = vmatpush2.bf16.msra.mxu0 0
          %2103 = vmatprep.subr.bf16.mxu0 0
          %2104 = vmatpush2.bf16.msra.mxu0 0
          %2105 = vmatprep.subr.bf16.mxu0 0
          %2106 = vmatpush2.bf16.msra.mxu0 0
          %2107 = vmatprep.subr.bf16.mxu0 0
          %2108 = vmatpush2.bf16.msra.mxu0 0
          %2109 = vmatprep.mubr.bf16.mxu0 0
          %2110 = vmatmul.mubr.bf16.gmra.mxu0 %v2025
          %v2111 = vpop.f32.mrf.mxu0
          %v2112 = vadd.f32 0.0, %v2111
          %v2113 = vpop.f32.mrf.mxu0
          %v2114 = vpop.f32.mrf.mxu0
          %v2115 = vpop.f32.mrf.mxu0
          %2116 = vdwg.mxu0
          %v2117 = vadd.f32 %v1988, %v2071
          %v2118 = vadd.f32 %v1989, %v2073
          %v2119 = vadd.f32 %v1990, %v2112
          %v2120 = vld [vmem:[%s263] sm:$0xff]
          %s2121 = scalar_lea.vmem %s1, 20
          %v2122 = vld [vmem:[%s2121] sm:$0xf]
          %v2124 = vcombine.high %v2120, %v2120
          %v2126 = vunpack.c.l.s4 1983009808
          %v2127 = vunpack.c.0.s8 %v2126
          %v2128 = vlaneseq
          %v2129 = vshrl.u32 %v2128, 7
          %v2130 = vsub.s32 %v2127, %v2129
          %v2131 = vrot.slane %v2120, %v2130
          %v2133 = vunpack.c.l.s4 1983009808
          %v2134 = vunpack.c.0.s8 %v2133
          %v2135 = vlaneseq
          %v2136 = vshrl.u32 %v2135, 7
          %v2137 = vsub.s32 %v2134, %v2136
          %v2138 = vrot.slane %v2124, %v2137
          %v2139 = vcombine.high %v2131, %v2131
          %v2140 = vcombine.high %v2138, %v2138
          %2141 = vrot.lane.b32.xlu0 %v2131, 84
          %v2142 = vpop.permute.xlu0 %2141
          %2143 = vrot.lane.b32.xlu0 %v2139, 84
          %v2144 = vpop.permute.xlu0 %2143
          %2145 = vrot.lane.b32.xlu0 %v2138, 84
          %v2146 = vpop.permute.xlu0 %2145
          %2147 = vrot.lane.b32.xlu0 %v2140, 84
          %v2148 = vpop.permute.xlu0 %2147
          %vm2149 = vcmask 687104
          %v2150 = vsel %vm2149, %v2142, %v2144
          %v2151 = vsel %vm2149, %v2144, %v2146
          %v2152 = vsel %vm2149, %v2146, %v2148
          %v2154 = vsel %vm1528, %v2122, 0
          %v2157 = vsel %vm1532, %v2150, 0
          %v2160 = vsel %vm1532, %v2151, 0
          %v2163 = vsel %vm1532, %v2152, 0
          %2165 = vmatprep.subr.bf16.mxu0 0
          %2166 = vmatpush1.bf16.msra.mxu0 0
          %2167 = vmatprep.subr.bf16.mxu0 0
          %2168 = vmatpush1.bf16.msra.mxu0 0
          %2169 = vmatprep.subr.bf16.mxu0 0
          %2170 = vmatpush1.bf16.msra.mxu0 0
          %2171 = vmatprep.subr.bf16.mxu0 0
          %2172 = vmatpush1.bf16.msra.mxu0 0
          %2173 = vmatprep.subr.bf16.mxu0 0
          %2174 = vmatpush1.bf16.msra.mxu0 0
          %2175 = vmatprep.subr.bf16.mxu0 0
          %2176 = vmatpush1.bf16.msra.mxu0 0
          %2177 = vmatprep.subr.bf16.mxu0 0
          %2178 = vmatpush1.bf16.msra.mxu0 0
          %2179 = vmatprep.subr.bf16.mxu0 %v2160
          %2180 = vmatpush1.bf16.msra.mxu0 %v2157
          %2181 = vmatprep.subr.bf16.mxu0 0
          %2182 = vmatpush2.bf16.msra.mxu0 0
          %2183 = vmatprep.subr.bf16.mxu0 0
          %2184 = vmatpush2.bf16.msra.mxu0 0
          %2185 = vmatprep.subr.bf16.mxu0 0
          %2186 = vmatpush2.bf16.msra.mxu0 0
          %2187 = vmatprep.subr.bf16.mxu0 0
          %2188 = vmatpush2.bf16.msra.mxu0 0
          %2189 = vmatprep.subr.bf16.mxu0 0
          %2190 = vmatpush2.bf16.msra.mxu0 0
          %2191 = vmatprep.subr.bf16.mxu0 0
          %2192 = vmatpush2.bf16.msra.mxu0 0
          %2193 = vmatprep.subr.bf16.mxu0 0
          %2194 = vmatpush2.bf16.msra.mxu0 0
          %2195 = vmatprep.subr.bf16.mxu0 0
          %2196 = vmatpush2.bf16.msra.mxu0 0
          %2197 = vmatprep.mubr.bf16.mxu0 0
          %2198 = vmatmul.mubr.bf16.gmra.mxu0 %v2154
          %v2199 = vpop.f32.mrf.mxu0
          %v2200 = vadd.f32 0.0, %v2199
          %v2201 = vpop.f32.mrf.mxu0
          %v2202 = vadd.f32 0.0, %v2201
          %v2203 = vpop.f32.mrf.mxu0
          %v2204 = vpop.f32.mrf.mxu0
          %2205 = vdwg.mxu0
          %2206 = vmatprep.subr.bf16.mxu0 0
          %2207 = vmatpush1.bf16.msra.mxu0 0
          %2208 = vmatprep.subr.bf16.mxu0 0
          %2209 = vmatpush1.bf16.msra.mxu0 0
          %2210 = vmatprep.subr.bf16.mxu0 0
          %2211 = vmatpush1.bf16.msra.mxu0 0
          %2212 = vmatprep.subr.bf16.mxu0 0
          %2213 = vmatpush1.bf16.msra.mxu0 0
          %2214 = vmatprep.subr.bf16.mxu0 0
          %2215 = vmatpush1.bf16.msra.mxu0 0
          %2216 = vmatprep.subr.bf16.mxu0 0
          %2217 = vmatpush1.bf16.msra.mxu0 0
          %2218 = vmatprep.subr.bf16.mxu0 0
          %2219 = vmatpush1.bf16.msra.mxu0 0
          %2220 = vmatprep.subr.bf16.mxu0 0
          %2221 = vmatpush1.bf16.msra.mxu0 %v2163
          %2222 = vmatprep.subr.bf16.mxu0 0
          %2223 = vmatpush2.bf16.msra.mxu0 0
          %2224 = vmatprep.subr.bf16.mxu0 0
          %2225 = vmatpush2.bf16.msra.mxu0 0
          %2226 = vmatprep.subr.bf16.mxu0 0
          %2227 = vmatpush2.bf16.msra.mxu0 0
          %2228 = vmatprep.subr.bf16.mxu0 0
          %2229 = vmatpush2.bf16.msra.mxu0 0
          %2230 = vmatprep.subr.bf16.mxu0 0
          %2231 = vmatpush2.bf16.msra.mxu0 0
          %2232 = vmatprep.subr.bf16.mxu0 0
          %2233 = vmatpush2.bf16.msra.mxu0 0
          %2234 = vmatprep.subr.bf16.mxu0 0
          %2235 = vmatpush2.bf16.msra.mxu0 0
          %2236 = vmatprep.subr.bf16.mxu0 0
          %2237 = vmatpush2.bf16.msra.mxu0 0
          %2238 = vmatprep.mubr.bf16.mxu0 0
          %2239 = vmatmul.mubr.bf16.gmra.mxu0 %v2154
          %v2240 = vpop.f32.mrf.mxu0
          %v2241 = vadd.f32 0.0, %v2240
          %v2242 = vpop.f32.mrf.mxu0
          %v2243 = vpop.f32.mrf.mxu0
          %v2244 = vpop.f32.mrf.mxu0
          %2245 = vdwg.mxu0
          %v2246 = vadd.f32 %v2117, %v2200
          %v2247 = vadd.f32 %v2118, %v2202
          %v2248 = vadd.f32 %v2119, %v2241
          %v2249 = vld [vmem:[%s263] sm:$0xff]
          %s2250 = scalar_lea.vmem %s1, 24
          %v2251 = vld [vmem:[%s2250] sm:$0xf]
          %v2253 = vcombine.high %v2249, %v2249
          %v2255 = vunpack.c.l.s4 1983009808
          %v2256 = vunpack.c.0.s8 %v2255
          %v2257 = vlaneseq
          %v2258 = vshrl.u32 %v2257, 7
          %v2259 = vsub.s32 %v2256, %v2258
          %v2260 = vrot.slane %v2249, %v2259
          %v2262 = vunpack.c.l.s4 1983009808
          %v2263 = vunpack.c.0.s8 %v2262
          %v2264 = vlaneseq
          %v2265 = vshrl.u32 %v2264, 7
          %v2266 = vsub.s32 %v2263, %v2265
          %v2267 = vrot.slane %v2253, %v2266
          %v2268 = vcombine.high %v2260, %v2260
          %v2269 = vcombine.high %v2267, %v2267
          %2270 = vrot.lane.b32.xlu0 %v2260, 48
          %v2271 = vpop.permute.xlu0 %2270
          %2272 = vrot.lane.b32.xlu0 %v2268, 48
          %v2273 = vpop.permute.xlu0 %2272
          %2274 = vrot.lane.b32.xlu0 %v2267, 48
          %v2275 = vpop.permute.xlu0 %2274
          %2276 = vrot.lane.b32.xlu0 %v2269, 48
          %v2277 = vpop.permute.xlu0 %2276
          %vm2278 = vcmask 392192
          %v2279 = vsel %vm2278, %v2271, %v2273
          %v2280 = vsel %vm2278, %v2273, %v2275
          %v2281 = vsel %vm2278, %v2275, %v2277
          %v2283 = vsel %vm1528, %v2251, 0
          %v2286 = vsel %vm1532, %v2279, 0
          %v2289 = vsel %vm1532, %v2280, 0
          %v2292 = vsel %vm1532, %v2281, 0
          %2294 = vmatprep.subr.bf16.mxu0 0
          %2295 = vmatpush1.bf16.msra.mxu0 0
          %2296 = vmatprep.subr.bf16.mxu0 0
          %2297 = vmatpush1.bf16.msra.mxu0 0
          %2298 = vmatprep.subr.bf16.mxu0 0
          %2299 = vmatpush1.bf16.msra.mxu0 0
          %2300 = vmatprep.subr.bf16.mxu0 0
          %2301 = vmatpush1.bf16.msra.mxu0 0
          %2302 = vmatprep.subr.bf16.mxu0 0
          %2303 = vmatpush1.bf16.msra.mxu0 0
          %2304 = vmatprep.subr.bf16.mxu0 0
          %2305 = vmatpush1.bf16.msra.mxu0 0
          %2306 = vmatprep.subr.bf16.mxu0 0
          %2307 = vmatpush1.bf16.msra.mxu0 0
          %2308 = vmatprep.subr.bf16.mxu0 %v2289
          %2309 = vmatpush1.bf16.msra.mxu0 %v2286
          %2310 = vmatprep.subr.bf16.mxu0 0
          %2311 = vmatpush2.bf16.msra.mxu0 0
          %2312 = vmatprep.subr.bf16.mxu0 0
          %2313 = vmatpush2.bf16.msra.mxu0 0
          %2314 = vmatprep.subr.bf16.mxu0 0
          %2315 = vmatpush2.bf16.msra.mxu0 0
          %2316 = vmatprep.subr.bf16.mxu0 0
          %2317 = vmatpush2.bf16.msra.mxu0 0
          %2318 = vmatprep.subr.bf16.mxu0 0
          %2319 = vmatpush2.bf16.msra.mxu0 0
          %2320 = vmatprep.subr.bf16.mxu0 0
          %2321 = vmatpush2.bf16.msra.mxu0 0
          %2322 = vmatprep.subr.bf16.mxu0 0
          %2323 = vmatpush2.bf16.msra.mxu0 0
          %2324 = vmatprep.subr.bf16.mxu0 0
          %2325 = vmatpush2.bf16.msra.mxu0 0
          %2326 = vmatprep.mubr.bf16.mxu0 0
          %2327 = vmatmul.mubr.bf16.gmra.mxu0 %v2283
          %v2328 = vpop.f32.mrf.mxu0
          %v2329 = vadd.f32 0.0, %v2328
          %v2330 = vpop.f32.mrf.mxu0
          %v2331 = vadd.f32 0.0, %v2330
          %v2332 = vpop.f32.mrf.mxu0
          %v2333 = vpop.f32.mrf.mxu0
          %2334 = vdwg.mxu0
          %2335 = vmatprep.subr.bf16.mxu0 0
          %2336 = vmatpush1.bf16.msra.mxu0 0
          %2337 = vmatprep.subr.bf16.mxu0 0
          %2338 = vmatpush1.bf16.msra.mxu0 0
          %2339 = vmatprep.subr.bf16.mxu0 0
          %2340 = vmatpush1.bf16.msra.mxu0 0
          %2341 = vmatprep.subr.bf16.mxu0 0
          %2342 = vmatpush1.bf16.msra.mxu0 0
          %2343 = vmatprep.subr.bf16.mxu0 0
          %2344 = vmatpush1.bf16.msra.mxu0 0
          %2345 = vmatprep.subr.bf16.mxu0 0
          %2346 = vmatpush1.bf16.msra.mxu0 0
          %2347 = vmatprep.subr.bf16.mxu0 0
          %2348 = vmatpush1.bf16.msra.mxu0 0
          %2349 = vmatprep.subr.bf16.mxu0 0
          %2350 = vmatpush1.bf16.msra.mxu0 %v2292
          %2351 = vmatprep.subr.bf16.mxu0 0
          %2352 = vmatpush2.bf16.msra.mxu0 0
          %2353 = vmatprep.subr.bf16.mxu0 0
          %2354 = vmatpush2.bf16.msra.mxu0 0
          %2355 = vmatprep.subr.bf16.mxu0 0
          %2356 = vmatpush2.bf16.msra.mxu0 0
          %2357 = vmatprep.subr.bf16.mxu0 0
          %2358 = vmatpush2.bf16.msra.mxu0 0
          %2359 = vmatprep.subr.bf16.mxu0 0
          %2360 = vmatpush2.bf16.msra.mxu0 0
          %2361 = vmatprep.subr.bf16.mxu0 0
          %2362 = vmatpush2.bf16.msra.mxu0 0
          %2363 = vmatprep.subr.bf16.mxu0 0
          %2364 = vmatpush2.bf16.msra.mxu0 0
          %2365 = vmatprep.subr.bf16.mxu0 0
          %2366 = vmatpush2.bf16.msra.mxu0 0
          %2367 = vmatprep.mubr.bf16.mxu0 0
          %2368 = vmatmul.mubr.bf16.gmra.mxu0 %v2283
          %v2369 = vpop.f32.mrf.mxu0
          %v2370 = vadd.f32 0.0, %v2369
          %v2371 = vpop.f32.mrf.mxu0
          %v2372 = vpop.f32.mrf.mxu0
          %v2373 = vpop.f32.mrf.mxu0
          %2374 = vdwg.mxu0
          %v2375 = vadd.f32 %v2246, %v2329
          %v2376 = vadd.f32 %v2247, %v2331
          %v2377 = vadd.f32 %v2248, %v2370
          %v2378 = vld [vmem:[%s263] sm:$0xff]
          %s2379 = scalar_lea.vmem %s1, 28
          %v2380 = vld [vmem:[%s2379] sm:$0xf]
          %v2382 = vcombine.high %v2378, %v2378
          %v2384 = vunpack.c.l.s4 1983009808
          %v2385 = vunpack.c.0.s8 %v2384
          %v2386 = vlaneseq
          %v2387 = vshrl.u32 %v2386, 7
          %v2388 = vsub.s32 %v2385, %v2387
          %v2389 = vrot.slane %v2378, %v2388
          %v2391 = vunpack.c.l.s4 1983009808
          %v2392 = vunpack.c.0.s8 %v2391
          %v2393 = vlaneseq
          %v2394 = vshrl.u32 %v2393, 7
          %v2395 = vsub.s32 %v2392, %v2394
          %v2396 = vrot.slane %v2382, %v2395
          %v2397 = vcombine.high %v2389, %v2389
          %v2398 = vcombine.high %v2396, %v2396
          %2399 = vrot.lane.b32.xlu0 %v2389, 46
          %v2400 = vpop.permute.xlu0 %2399
          %2401 = vrot.lane.b32.xlu0 %v2397, 46
          %v2402 = vpop.permute.xlu0 %2401
          %2403 = vrot.lane.b32.xlu0 %v2396, 46
          %v2404 = vpop.permute.xlu0 %2403
          %2405 = vrot.lane.b32.xlu0 %v2398, 46
          %v2406 = vpop.permute.xlu0 %2405
          %vm2407 = vcmask 375808
          %v2408 = vsel %vm2407, %v2400, %v2402
          %v2409 = vsel %vm2407, %v2402, %v2404
          %v2410 = vsel %vm2407, %v2404, %v2406
          %v2412 = vsel %vm1528, %v2380, 0
          %v2415 = vsel %vm1532, %v2408, 0
          %v2418 = vsel %vm1532, %v2409, 0
          %v2421 = vsel %vm1532, %v2410, 0
          %2423 = vmatprep.subr.bf16.mxu0 0
          %2424 = vmatpush1.bf16.msra.mxu0 0
          %2425 = vmatprep.subr.bf16.mxu0 0
          %2426 = vmatpush1.bf16.msra.mxu0 0
          %2427 = vmatprep.subr.bf16.mxu0 0
          %2428 = vmatpush1.bf16.msra.mxu0 0
          %2429 = vmatprep.subr.bf16.mxu0 0
          %2430 = vmatpush1.bf16.msra.mxu0 0
          %2431 = vmatprep.subr.bf16.mxu0 0
          %2432 = vmatpush1.bf16.msra.mxu0 0
          %2433 = vmatprep.subr.bf16.mxu0 0
          %2434 = vmatpush1.bf16.msra.mxu0 0
          %2435 = vmatprep.subr.bf16.mxu0 0
          %2436 = vmatpush1.bf16.msra.mxu0 0
          %2437 = vmatprep.subr.bf16.mxu0 %v2418
          %2438 = vmatpush1.bf16.msra.mxu0 %v2415
          %2439 = vmatprep.subr.bf16.mxu0 0
          %2440 = vmatpush2.bf16.msra.mxu0 0
          %2441 = vmatprep.subr.bf16.mxu0 0
          %2442 = vmatpush2.bf16.msra.mxu0 0
          %2443 = vmatprep.subr.bf16.mxu0 0
          %2444 = vmatpush2.bf16.msra.mxu0 0
          %2445 = vmatprep.subr.bf16.mxu0 0
          %2446 = vmatpush2.bf16.msra.mxu0 0
          %2447 = vmatprep.subr.bf16.mxu0 0
          %2448 = vmatpush2.bf16.msra.mxu0 0
          %2449 = vmatprep.subr.bf16.mxu0 0
          %2450 = vmatpush2.bf16.msra.mxu0 0
          %2451 = vmatprep.subr.bf16.mxu0 0
          %2452 = vmatpush2.bf16.msra.mxu0 0
          %2453 = vmatprep.subr.bf16.mxu0 0
          %2454 = vmatpush2.bf16.msra.mxu0 0
          %2455 = vmatprep.mubr.bf16.mxu0 0
          %2456 = vmatmul.mubr.bf16.gmra.mxu0 %v2412
          %v2457 = vpop.f32.mrf.mxu0
          %v2458 = vadd.f32 0.0, %v2457
          %v2459 = vpop.f32.mrf.mxu0
          %v2460 = vadd.f32 0.0, %v2459
          %v2461 = vpop.f32.mrf.mxu0
          %v2462 = vpop.f32.mrf.mxu0
          %2463 = vdwg.mxu0
          %2464 = vmatprep.subr.bf16.mxu0 0
          %2465 = vmatpush1.bf16.msra.mxu0 0
          %2466 = vmatprep.subr.bf16.mxu0 0
          %2467 = vmatpush1.bf16.msra.mxu0 0
          %2468 = vmatprep.subr.bf16.mxu0 0
          %2469 = vmatpush1.bf16.msra.mxu0 0
          %2470 = vmatprep.subr.bf16.mxu0 0
          %2471 = vmatpush1.bf16.msra.mxu0 0
          %2472 = vmatprep.subr.bf16.mxu0 0
          %2473 = vmatpush1.bf16.msra.mxu0 0
          %2474 = vmatprep.subr.bf16.mxu0 0
          %2475 = vmatpush1.bf16.msra.mxu0 0
          %2476 = vmatprep.subr.bf16.mxu0 0
          %2477 = vmatpush1.bf16.msra.mxu0 0
          %2478 = vmatprep.subr.bf16.mxu0 0
          %2479 = vmatpush1.bf16.msra.mxu0 %v2421
          %2480 = vmatprep.subr.bf16.mxu0 0
          %2481 = vmatpush2.bf16.msra.mxu0 0
          %2482 = vmatprep.subr.bf16.mxu0 0
          %2483 = vmatpush2.bf16.msra.mxu0 0
          %2484 = vmatprep.subr.bf16.mxu0 0
          %2485 = vmatpush2.bf16.msra.mxu0 0
          %2486 = vmatprep.subr.bf16.mxu0 0
          %2487 = vmatpush2.bf16.msra.mxu0 0
          %2488 = vmatprep.subr.bf16.mxu0 0
          %2489 = vmatpush2.bf16.msra.mxu0 0
          %2490 = vmatprep.subr.bf16.mxu0 0
          %2491 = vmatpush2.bf16.msra.mxu0 0
          %2492 = vmatprep.subr.bf16.mxu0 0
          %2493 = vmatpush2.bf16.msra.mxu0 0
          %2494 = vmatprep.subr.bf16.mxu0 0
          %2495 = vmatpush2.bf16.msra.mxu0 0
          %2496 = vmatprep.mubr.bf16.mxu0 0
          %2497 = vmatmul.mubr.bf16.gmra.mxu0 %v2412
          %v2498 = vpop.f32.mrf.mxu0
          %v2499 = vadd.f32 0.0, %v2498
          %v2500 = vpop.f32.mrf.mxu0
          %v2501 = vpop.f32.mrf.mxu0
          %v2502 = vpop.f32.mrf.mxu0
          %2503 = vdwg.mxu0
          %v2504 = vadd.f32 %v2375, %v2458
          %v2505 = vadd.f32 %v2376, %v2460
          %v2506 = vadd.f32 %v2377, %v2499
          %v2507 = vld [vmem:[%s263] sm:$0xff]
          %s2508 = scalar_lea.vmem %s1, 32
          %v2509 = vld [vmem:[%s2508] sm:$0xf]
          %v2511 = vcombine.high %v2507, %v2507
          %v2513 = vunpack.c.l.s4 1983009808
          %v2514 = vunpack.c.0.s8 %v2513
          %v2515 = vlaneseq
          %v2516 = vshrl.u32 %v2515, 7
          %v2517 = vsub.s32 %v2514, %v2516
          %v2518 = vrot.slane %v2507, %v2517
          %v2520 = vunpack.c.l.s4 1983009808
          %v2521 = vunpack.c.0.s8 %v2520
          %v2522 = vlaneseq
          %v2523 = vshrl.u32 %v2522, 7
          %v2524 = vsub.s32 %v2521, %v2523
          %v2525 = vrot.slane %v2511, %v2524
          %v2526 = vcombine.high %v2518, %v2518
          %v2527 = vcombine.high %v2525, %v2525
          %2528 = vrot.lane.b32.xlu0 %v2518, 44
          %v2529 = vpop.permute.xlu0 %2528
          %2530 = vrot.lane.b32.xlu0 %v2526, 44
          %v2531 = vpop.permute.xlu0 %2530
          %2532 = vrot.lane.b32.xlu0 %v2525, 44
          %v2533 = vpop.permute.xlu0 %2532
          %2534 = vrot.lane.b32.xlu0 %v2527, 44
          %v2535 = vpop.permute.xlu0 %2534
          %vm2536 = vcmask 359424
          %v2537 = vsel %vm2536, %v2529, %v2531
          %v2538 = vsel %vm2536, %v2531, %v2533
          %v2539 = vsel %vm2536, %v2533, %v2535
          %v2541 = vsel %vm1528, %v2509, 0
          %v2544 = vsel %vm1532, %v2537, 0
          %v2547 = vsel %vm1532, %v2538, 0
          %v2550 = vsel %vm1532, %v2539, 0
          %2552 = vmatprep.subr.bf16.mxu0 0
          %2553 = vmatpush1.bf16.msra.mxu0 0
          %2554 = vmatprep.subr.bf16.mxu0 0
          %2555 = vmatpush1.bf16.msra.mxu0 0
          %2556 = vmatprep.subr.bf16.mxu0 0
          %2557 = vmatpush1.bf16.msra.mxu0 0
          %2558 = vmatprep.subr.bf16.mxu0 0
          %2559 = vmatpush1.bf16.msra.mxu0 0
          %2560 = vmatprep.subr.bf16.mxu0 0
          %2561 = vmatpush1.bf16.msra.mxu0 0
          %2562 = vmatprep.subr.bf16.mxu0 0
          %2563 = vmatpush1.bf16.msra.mxu0 0
          %2564 = vmatprep.subr.bf16.mxu0 0
          %2565 = vmatpush1.bf16.msra.mxu0 0
          %2566 = vmatprep.subr.bf16.mxu0 %v2547
          %2567 = vmatpush1.bf16.msra.mxu0 %v2544
          %2568 = vmatprep.subr.bf16.mxu0 0
          %2569 = vmatpush2.bf16.msra.mxu0 0
          %2570 = vmatprep.subr.bf16.mxu0 0
          %2571 = vmatpush2.bf16.msra.mxu0 0
          %2572 = vmatprep.subr.bf16.mxu0 0
          %2573 = vmatpush2.bf16.msra.mxu0 0
          %2574 = vmatprep.subr.bf16.mxu0 0
          %2575 = vmatpush2.bf16.msra.mxu0 0
          %2576 = vmatprep.subr.bf16.mxu0 0
          %2577 = vmatpush2.bf16.msra.mxu0 0
          %2578 = vmatprep.subr.bf16.mxu0 0
          %2579 = vmatpush2.bf16.msra.mxu0 0
          %2580 = vmatprep.subr.bf16.mxu0 0
          %2581 = vmatpush2.bf16.msra.mxu0 0
          %2582 = vmatprep.subr.bf16.mxu0 0
          %2583 = vmatpush2.bf16.msra.mxu0 0
          %2584 = vmatprep.mubr.bf16.mxu0 0
          %2585 = vmatmul.mubr.bf16.gmra.mxu0 %v2541
          %v2586 = vpop.f32.mrf.mxu0
          %v2587 = vadd.f32 0.0, %v2586
          %v2588 = vpop.f32.mrf.mxu0
          %v2589 = vadd.f32 0.0, %v2588
          %v2590 = vpop.f32.mrf.mxu0
          %v2591 = vpop.f32.mrf.mxu0
          %2592 = vdwg.mxu0
          %2593 = vmatprep.subr.bf16.mxu0 0
          %2594 = vmatpush1.bf16.msra.mxu0 0
          %2595 = vmatprep.subr.bf16.mxu0 0
          %2596 = vmatpush1.bf16.msra.mxu0 0
          %2597 = vmatprep.subr.bf16.mxu0 0
          %2598 = vmatpush1.bf16.msra.mxu0 0
          %2599 = vmatprep.subr.bf16.mxu0 0
          %2600 = vmatpush1.bf16.msra.mxu0 0
          %2601 = vmatprep.subr.bf16.mxu0 0
          %2602 = vmatpush1.bf16.msra.mxu0 0
          %2603 = vmatprep.subr.bf16.mxu0 0
          %2604 = vmatpush1.bf16.msra.mxu0 0
          %2605 = vmatprep.subr.bf16.mxu0 0
          %2606 = vmatpush1.bf16.msra.mxu0 0
          %2607 = vmatprep.subr.bf16.mxu0 0
          %2608 = vmatpush1.bf16.msra.mxu0 %v2550
          %2609 = vmatprep.subr.bf16.mxu0 0
          %2610 = vmatpush2.bf16.msra.mxu0 0
          %2611 = vmatprep.subr.bf16.mxu0 0
          %2612 = vmatpush2.bf16.msra.mxu0 0
          %2613 = vmatprep.subr.bf16.mxu0 0
          %2614 = vmatpush2.bf16.msra.mxu0 0
          %2615 = vmatprep.subr.bf16.mxu0 0
          %2616 = vmatpush2.bf16.msra.mxu0 0
          %2617 = vmatprep.subr.bf16.mxu0 0
          %2618 = vmatpush2.bf16.msra.mxu0 0
          %2619 = vmatprep.subr.bf16.mxu0 0
          %2620 = vmatpush2.bf16.msra.mxu0 0
          %2621 = vmatprep.subr.bf16.mxu0 0
          %2622 = vmatpush2.bf16.msra.mxu0 0
          %2623 = vmatprep.subr.bf16.mxu0 0
          %2624 = vmatpush2.bf16.msra.mxu0 0
          %2625 = vmatprep.mubr.bf16.mxu0 0
          %2626 = vmatmul.mubr.bf16.gmra.mxu0 %v2541
          %v2627 = vpop.f32.mrf.mxu0
          %v2628 = vadd.f32 0.0, %v2627
          %v2629 = vpop.f32.mrf.mxu0
          %v2630 = vpop.f32.mrf.mxu0
          %v2631 = vpop.f32.mrf.mxu0
          %2632 = vdwg.mxu0
          %v2633 = vadd.f32 %v2504, %v2587
          %v2634 = vadd.f32 %v2505, %v2589
          %v2635 = vadd.f32 %v2506, %v2628
          %v2636 = vld [vmem:[%s2] sm:$0xff]
          %2638 = vset.pattern.permute.xlu0 0
          %2639 = vperm.xlu0 %2638, %v2636
          %v2640 = vpop.permute.xlu0 %2639
          %v2642 = vadd.f32 %v2633, %v2640
          %v2643 = vadd.f32 %v2634, %v2640
          %v2644 = vadd.f32 %v2635, %v2640
          %v2645 = vld [vmem:[#allocation4] sm:$0xff]
          %2647 = vset.pattern.permute.xlu0 0
          %2648 = vperm.xlu0 %2647, %v2645
          %v2649 = vpop.permute.xlu0 %2648
          %v2651 = vmul.f32 %v2642, %v2649
          %v2652 = vmul.f32 %v2643, %v2649
          %v2653 = vmul.f32 %v2644, %v2649
          %v2654 = vld [vmem:[#allocation5] sm:$0xff]
          %2656 = vset.pattern.permute.xlu0 0
          %2657 = vperm.xlu0 %2656, %v2654
          %v2658 = vpop.permute.xlu0 %2657
          %v2660 = vadd.f32 %v2651, %v2658
          %v2661 = vadd.f32 %v2652, %v2658
          %v2662 = vadd.f32 %v2653, %v2658
          %v2663 = vmax.f32 %v2660, 0.0
          %v2664 = vmax.f32 %v2661, 0.0
          %v2665 = vmax.f32 %v2662, 0.0
          %2666 = vst [vmem:[%s258] sm:$0xff] %v2663
          %2667 = vst [vmem:[%s258 + $0x8] sm:$0xff] %v2664
          %2668 = vst [vmem:[%s258 + $0x10] sm:$0xff] %v2665
        $region60: #{tpu_custom_call.1} parent=43 // pred_fallthru
          _
        %s2669 = sand.u32 %s173, 1
        %s2670 = scalar_lea.sflag [#allocation7], %s2669
        %s2671 = sand.u32 %s173, 1
        %s2672 = smul.addr %s2671, 24
        %s2673 = scalar_lea.vmem [#allocation6], %s2672
        // Predicated region
        $region61: #{tpu_custom_call.1} parent=43 // pred_check
          %p2674 = pneg %p183
        $region62: #{tpu_custom_call.1} parent=43 // pred_check_branch
          %2676 = sbr.rel (%p2674) target = $region64
        $region63: #{tpu_custom_call.1} parent=43 // pred_region
          %s2677 = smul.u32 %s24, %s25
          %s2679 = ssub.s32 384, 384
          %2680 = vsyncadd %s2670, %s2679
          %s2681 = smul.addr %s2677, 3
          %s2682 = smul.addr %s2681, 128
          %s2683 = scalar_lea.hbm %s6, %s2682
          %s2685 = sshll.u32 %s2673, 4
          %s2686 = int_to_ptr.vmem [resolvable:$true] %s2685
          %2688 = dma.vmem_to_hbm [thread:$0]  %s2686, 384, %s2683, %s2670
        $region64: #{tpu_custom_call.1} parent=43 // pred_fallthru
          _
      $region44: #{tpu_custom_call.1} parent=5 // pred_fallthru
        _
      %p2689 = scmp.le.s32.totalorder 2, %s15
      // Predicated region
      $region65: #{tpu_custom_call.1} parent=5 // pred_check
        %p2690 = pneg %p2689
      $region66: #{tpu_custom_call.1} parent=5 // pred_check_branch
        %2692 = sbr.rel (%p2690) target = $region68
      $region67: #{tpu_custom_call.1} parent=5 // pred_region
        %s2693 = ssub.s32 %s15, 2
        // Predicated region
        $region69: #{tpu_custom_call.1} parent=67 // pred_check
          %p2694 = pneg %p189
        $region70: #{tpu_custom_call.1} parent=67 // pred_check_branch
          %2696 = sbr.rel (%p2694) target = $region72
        $region71: #{tpu_custom_call.1} parent=67 // pred_region
          %s2697 = sand.u32 %s174, 1
          %s2698 = scalar_lea.sflag [#allocation7], %s2697
          %s2699 = sand.u32 %s174, 1
          %s2700 = smul.addr %s2699, 24
          %s2701 = scalar_lea.vmem [#allocation6], %s2700
          %2702 = dma.done %s2698, 384
        $region72: #{tpu_custom_call.1} parent=67 // pred_fallthru
          _
      $region68: #{tpu_custom_call.1} parent=5 // pred_fallthru
        _
    $region6: #{tpu_custom_call.1} parent=1 // loop_footer
      %s19 = sadd.s32 1, %s15
    $region7: #{tpu_custom_call.1} parent=1 // loop_footer_branch
      %14 = sbr.rel target = $region3
    $region8: #{tpu_custom_call.1} parent=1 // loop_exit
      _
    %2703 = vsyncpa [#allocation7], 1
    %s2704 = scalar_lea.sflag [#allocation7], 1
    %2705 = vsyncpa %s2704, 1

</llo_original>
